<compile_context>
chip_gen: v7x
topology: tpu7x:2x2x1
jax: 0.10.0
libtpu: 0.0.40
codegen_flags: <defaults>
</compile_context>

<pallas_src>
import jax
import jax.numpy as jnp
from jax.experimental import pallas as pl
from jax.experimental.pallas import tpu as pltpu


# ----------------------------------------------------------------------------
# helpers
# ----------------------------------------------------------------------------
def _round_up(x, m):
    return (x + m - 1) // m * m


def _largest_divisor_le(n, cap):
    for d in range(min(n, cap), 0, -1):
        if n % d == 0:
            return d
    return 1


# ----------------------------------------------------------------------------
# Pallas kernels
# ----------------------------------------------------------------------------
def _rnn_layer_kernel(x_ref, h0_ref, wih_ref, whh_ref, b_ref,
                      out_ref, hlast_ref, h_scratch, xp_scratch):
    """One Elman-RNN ('relu') layer over a (TT timesteps, TB batch) block.

    x_ref     : (TT, TB, Din) bf16   input block for this time block
    h0_ref    : (TB, H)       f32    initial hidden state for this batch tile
    wih_ref   : (Din, H)      bf16   input->hidden weight (transposed)
    whh_ref   : (H, H)        bf16   hidden->hidden weight (transposed)
    b_ref     : (1, H)        f32    pre-summed bias (b_ih + b_hh)
    out_ref   : (TT, TB, H)   bf16   per-timestep hidden output block
    hlast_ref : (TB, H)       f32    final hidden state for this batch tile
    h_scratch : (TB, H)       f32    carried hidden state across time blocks
    xp_scratch: (TT*TB, H)    f32    hoisted input projection for this block
    """
    tt, tb, din = x_ref.shape
    t = pl.program_id(1)

    @pl.when(t == 0)
    def _():
        h_scratch[...] = h0_ref[...]

    # Hoisted input projection: one big MXU call (M = TT*TB) per time block
    # instead of TT tiny matmuls on the serial critical path.
    x2d = x_ref[...].reshape(tt * tb, din)
    xp_scratch[...] = (
        jnp.dot(x2d, wih_ref[...], preferred_element_type=jnp.float32)
        + b_ref[...])

    whh = whh_ref[...]
    h = h_scratch[...]
    for i in range(tt):                          # fully unrolled, static slices
        pre = xp_scratch[pl.ds(i * tb, tb), :] + jnp.dot(
            h.astype(jnp.bfloat16), whh, preferred_element_type=jnp.float32)
        h = jnp.maximum(pre, 0.0)                # relu nonlinearity
        out_ref[i] = h.astype(out_ref.dtype)
    h_scratch[...] = h

    @pl.when(t == pl.num_programs(1) - 1)
    def _():
        hlast_ref[...] = h


def _rnn_layer_fc_kernel(x_ref, h0_ref, wih_ref, whh_ref, b_ref,
                         fcw_ref, fcb_ref,
                         y_ref, hlast_ref, h_scratch, xp_scratch, hblk_scratch):
    """Last RNN layer with the fc Linear fused into the same kernel.

    Extra args vs _rnn_layer_kernel:
      fcw_ref     : (H, O)     bf16
      fcb_ref     : (1, O)     f32
      y_ref       : (TT, TB, O) f32  fc output block
      hblk_scratch: (TT*TB, H) bf16  per-block hidden stash for the fc matmul
    """
    tt, tb, din = x_ref.shape
    t = pl.program_id(1)

    @pl.when(t == 0)
    def _():
        h_scratch[...] = h0_ref[...]

    x2d = x_ref[...].reshape(tt * tb, din)
    xp_scratch[...] = (
        jnp.dot(x2d, wih_ref[...], preferred_element_type=jnp.float32)
        + b_ref[...])

    whh = whh_ref[...]
    h = h_scratch[...]
    for i in range(tt):
        pre = xp_scratch[pl.ds(i * tb, tb), :] + jnp.dot(
            h.astype(jnp.bfloat16), whh, preferred_element_type=jnp.float32)
        h = jnp.maximum(pre, 0.0)
        hblk_scratch[pl.ds(i * tb, tb), :] = h.astype(hblk_scratch.dtype)
    h_scratch[...] = h

    # Fused fc projection: one (TT*TB, H) @ (H, O) MXU call per time block.
    y2d = (jnp.dot(hblk_scratch[...], fcw_ref[...],
                   preferred_element_type=jnp.float32) + fcb_ref[...])
    for i in range(tt):
        y_ref[i] = y2d[i * tb:(i + 1) * tb, :].astype(y_ref.dtype)

    @pl.when(t == pl.num_programs(1) - 1)
    def _():
        hlast_ref[...] = h


# ----------------------------------------------------------------------------
# pallas_call wrappers
# ----------------------------------------------------------------------------
def _run_rnn_layer(x_tbd, h0, w_ih, w_hh, b, tt, tb):
    """x_tbd: (T, Bp, Din) bf16 time-major. Returns ((T,Bp,H) bf16, (Bp,H) f32)."""
    T, Bp, Din = x_tbd.shape
    Hp = w_hh.shape[0]
    grid = (Bp // tb, T // tt)
    return pl.pallas_call(
        _rnn_layer_kernel,
        out_shape=(jax.ShapeDtypeStruct((T, Bp, Hp), jnp.bfloat16),
                   jax.ShapeDtypeStruct((Bp, Hp), jnp.float32)),
        grid_spec=pltpu.PrefetchScalarGridSpec(
            num_scalar_prefetch=0,
            grid=grid,
            in_specs=[
                pl.BlockSpec((tt, tb, Din), lambda bi, ti: (ti, bi, 0)),  # x
                pl.BlockSpec((tb, Hp), lambda bi, ti: (bi, 0)),           # h0
                pl.BlockSpec((Din, Hp), lambda bi, ti: (0, 0)),           # W_ih
                pl.BlockSpec((Hp, Hp), lambda bi, ti: (0, 0)),            # W_hh
                pl.BlockSpec((1, Hp), lambda bi, ti: (0, 0)),             # bias
            ],
            out_specs=[
                pl.BlockSpec((tt, tb, Hp), lambda bi, ti: (ti, bi, 0)),   # out
                pl.BlockSpec((tb, Hp), lambda bi, ti: (bi, 0)),           # h_n
            ],
            scratch_shapes=[
                pltpu.VMEM((tb, Hp), jnp.float32),        # carried hidden
                pltpu.VMEM((tt * tb, Hp), jnp.float32),   # input projection
            ],
        ),
        compiler_params=pltpu.CompilerParams(
            dimension_semantics=("parallel", "arbitrary")),
    )(x_tbd, h0, w_ih, w_hh, b)


def _run_rnn_fc_layer(x_tbd, h0, w_ih, w_hh, b, fc_w, fc_b, tt, tb):
    """Last layer + fused fc. Returns ((T,Bp,O) f32, (Bp,H) f32)."""
    T, Bp, Din = x_tbd.shape
    Hp = w_hh.shape[0]
    Op = fc_w.shape[1]
    grid = (Bp // tb, T // tt)
    return pl.pallas_call(
        _rnn_layer_fc_kernel,
        out_shape=(jax.ShapeDtypeStruct((T, Bp, Op), jnp.float32),
                   jax.ShapeDtypeStruct((Bp, Hp), jnp.float32)),
        grid_spec=pltpu.PrefetchScalarGridSpec(
            num_scalar_prefetch=0,
            grid=grid,
            in_specs=[
                pl.BlockSpec((tt, tb, Din), lambda bi, ti: (ti, bi, 0)),  # x
                pl.BlockSpec((tb, Hp), lambda bi, ti: (bi, 0)),           # h0
                pl.BlockSpec((Din, Hp), lambda bi, ti: (0, 0)),           # W_ih
                pl.BlockSpec((Hp, Hp), lambda bi, ti: (0, 0)),            # W_hh
                pl.BlockSpec((1, Hp), lambda bi, ti: (0, 0)),             # bias
                pl.BlockSpec((Hp, Op), lambda bi, ti: (0, 0)),            # fc_w
                pl.BlockSpec((1, Op), lambda bi, ti: (0, 0)),             # fc_b
            ],
            out_specs=[
                pl.BlockSpec((tt, tb, Op), lambda bi, ti: (ti, bi, 0)),   # y
                pl.BlockSpec((tb, Hp), lambda bi, ti: (bi, 0)),           # h_n
            ],
            scratch_shapes=[
                pltpu.VMEM((tb, Hp), jnp.float32),        # carried hidden
                pltpu.VMEM((tt * tb, Hp), jnp.float32),   # input projection
                pltpu.VMEM((tt * tb, Hp), jnp.bfloat16),  # hidden stash for fc
            ],
        ),
        compiler_params=pltpu.CompilerParams(
            dimension_semantics=("parallel", "arbitrary")),
    )(x_tbd, h0, w_ih, w_hh, b, fc_w, fc_b)


# ----------------------------------------------------------------------------
# parameter init / forward
# ----------------------------------------------------------------------------
def init_params(key, input_size, hidden_dim, output_size, num_layers):
    """PyTorch-shaped params, stored transposed: w_ih (d_in,H), w_hh (H,H)."""
    params = {"layers": []}
    bound = 1.0 / jnp.sqrt(hidden_dim)
    for layer in range(num_layers):
        d_in = input_size if layer == 0 else hidden_dim
        key, k1, k2, k3, k4 = jax.random.split(key, 5)
        params["layers"].append({
            "w_ih": jax.random.uniform(k1, (d_in, hidden_dim), jnp.float32,
                                       -bound, bound),
            "w_hh": jax.random.uniform(k2, (hidden_dim, hidden_dim),
                                       jnp.float32, -bound, bound),
            "b_ih": jax.random.uniform(k3, (1, hidden_dim), jnp.float32,
                                       -bound, bound),
            "b_hh": jax.random.uniform(k4, (1, hidden_dim), jnp.float32,
                                       -bound, bound),
        })
    key, k1, k2 = jax.random.split(key, 3)
    params["fc_w"] = jax.random.uniform(k1, (hidden_dim, output_size),
                                        jnp.float32, -bound, bound)
    params["fc_b"] = jax.random.uniform(k2, (1, output_size), jnp.float32,
                                        -bound, bound)
    return params


def init_hidden(num_layers, batch, hidden_dim):
    return jnp.zeros((num_layers, batch, hidden_dim), jnp.float32)


@jax.jit
def rnn_forward(params, x_btd, h0):
    """x_btd: (B, T, input_size) batch-first.  Returns (y, h_n):
       y:   (B, T, output_size)
       h_n: (num_layers, B, hidden_dim)
    """
    B, T, D = x_btd.shape
    H = params["layers"][0]["w_hh"].shape[0]
    O = params["fc_w"].shape[1]
    num_layers = len(params["layers"])

    # lane/sublane-dense padded sizes
    Bp = _round_up(B, 8)
    Dp = _round_up(D, 128)
    Hp = _round_up(H, 128)
    Op = _round_up(O, 128)
    tt = _largest_divisor_le(T, 16)                 # time block
    tb = 8 * _largest_divisor_le(Bp // 8, 8)        # batch tile (parallel axis)

    def pad_w(w, r, c):
        return jnp.pad(w, ((0, r - w.shape[0]), (0, c - w.shape[1])))

    # time-major, padded, bf16 input
    x = jnp.transpose(x_btd, (1, 0, 2))                                 # (T,B,D)
    x = jnp.pad(x, ((0, 0), (0, Bp - B), (0, Dp - D))).astype(jnp.bfloat16)
    h0p = jnp.pad(h0, ((0, 0), (0, Bp - B), (0, Hp - H))).astype(jnp.float32)

    h_finals = []
    y = None
    for li, lp in enumerate(params["layers"]):
        din = Dp if li == 0 else Hp
        w_ih = pad_w(lp["w_ih"], din, Hp).astype(jnp.bfloat16)
        w_hh = pad_w(lp["w_hh"], Hp, Hp).astype(jnp.bfloat16)
        b = pad_w(lp["b_ih"] + lp["b_hh"], 1, Hp).astype(jnp.float32)
        if li < num_layers - 1:
            x, h_last = _run_rnn_layer(x, h0p[li], w_ih, w_hh, b, tt, tb)
        else:
            fc_w = pad_w(params["fc_w"], Hp, Op).astype(jnp.bfloat16)
            fc_b = pad_w(params["fc_b"], 1, Op).astype(jnp.float32)
            y, h_last = _run_rnn_fc_layer(x, h0p[li], w_ih, w_hh, b,
                                          fc_w, fc_b, tt, tb)
        h_finals.append(h_last[:B, :H])

    y = jnp.transpose(y, (1, 0, 2))[:B, :, :O]                          # (B,T,O)
    return y, jnp.stack(h_finals, axis=0)


# ----------------------------------------------------------------------------
# pure-JAX reference mirroring the kernel numerics (bf16 MXU inputs, f32 acc)
# ----------------------------------------------------------------------------
def rnn_forward_ref(params, x_btd, h0):
    x = jnp.transpose(x_btd, (1, 0, 2)).astype(jnp.bfloat16)            # (T,B,D)
    num_layers = len(params["layers"])
    h_finals = []
    y = None
    for li, lp in enumerate(params["layers"]):
        w_ih = lp["w_ih"].astype(jnp.bfloat16)
        w_hh = lp["w_hh"].astype(jnp.bfloat16)
        b = (lp["b_ih"] + lp["b_hh"]).astype(jnp.float32)
        xp = jnp.einsum("tbd,dh->tbh", x, w_ih,
                        preferred_element_type=jnp.float32) + b

        def step(h, xp_t, w_hh=w_hh):
            h_new = jax.nn.relu(
                xp_t + jnp.dot(h.astype(jnp.bfloat16), w_hh,
                               preferred_element_type=jnp.float32))
            return h_new, h_new

        h_last, hs = jax.lax.scan(step, h0[li].astype(jnp.float32), xp)
        h_finals.append(h_last)
        if li == num_layers - 1:
            y = jnp.einsum("tbh,ho->tbo", hs.astype(jnp.bfloat16),
                           params["fc_w"].astype(jnp.bfloat16),
                           preferred_element_type=jnp.float32) + params["fc_b"]
        else:
            x = hs.astype(jnp.bfloat16)
    y = jnp.transpose(y, (1, 0, 2))
    return y, jnp.stack(h_finals, axis=0)


if __name__ == "__main__":
    B, T = 2, 8
    input_size, hidden_dim, output_size, num_layers = 16, 32, 10, 2

    key = jax.random.PRNGKey(0)
    key, xkey = jax.random.split(key)
    x = jax.random.normal(xkey, (B, T, input_size), jnp.float32)
    params = init_params(key, input_size, hidden_dim, output_size, num_layers)
    h0 = init_hidden(num_layers, B, hidden_dim)

    y, h_n = rnn_forward(params, x, h0)
    jax.block_until_ready((y, h_n))

    y_ref, h_ref = rnn_forward_ref(params, x, h0)
    assert y.shape == (B, T, output_size)
    assert h_n.shape == (num_layers, B, hidden_dim)
    assert jnp.allclose(y, y_ref, atol=1e-3, rtol=1e-3)
    assert jnp.allclose(h_n, h_ref, atol=1e-3, rtol=1e-3)

    print("KERNEL_OK")
</pallas_src>

<mosaic_0001>
module attributes {stable_mosaic.version = 11 : i64} {
  func.func @_rnn_layer_kernel(%arg0: i32, %arg1: i32, %arg2: memref<8x8x128xbf16, #tpu.memory_space<vmem>>, %arg3: memref<8x128xf32, #tpu.memory_space<vmem>>, %arg4: memref<128x128xbf16, #tpu.memory_space<vmem>>, %arg5: memref<128x128xbf16, #tpu.memory_space<vmem>>, %arg6: memref<1x128xf32, #tpu.memory_space<vmem>>, %arg7: memref<8x8x128xbf16, #tpu.memory_space<vmem>>, %arg8: memref<8x128xf32, #tpu.memory_space<vmem>>, %arg9: memref<8x128xf32, #tpu.memory_space<vmem>>, %arg10: memref<64x128xf32, #tpu.memory_space<vmem>>) attributes {dimension_semantics = [#tpu.dimension_semantics<parallel>, #tpu.dimension_semantics<arbitrary>], iteration_bounds = array<i64: 1, 1>, scalar_prefetch = 0 : i64, scratch_operands = 2 : i64, tpu.core_type = #tpu.core_type<tc>, window_params = [{transform_indices = @transform_0, window_bounds = array<i64: 8, 8, 128>}, {transform_indices = @transform_1, window_bounds = array<i64: 8, 128>}, {pipeline_mode = #tpu.pipeline_mode<synchronous>, transform_indices = @transform_2, window_bounds = array<i64: 128, 128>}, {pipeline_mode = #tpu.pipeline_mode<synchronous>, transform_indices = @transform_3, window_bounds = array<i64: 128, 128>}, {pipeline_mode = #tpu.pipeline_mode<synchronous>, transform_indices = @transform_4, window_bounds = array<i64: 1, 128>}, {transform_indices = @transform_5, window_bounds = array<i64: 8, 8, 128>}, {transform_indices = @transform_6, window_bounds = array<i64: 8, 128>}]} {
    %c0_i32 = arith.constant 0 : i32
    %0 = arith.cmpi eq, %arg1, %c0_i32 : i32
    %1 = arith.extui %0 : i1 to i32
    %c0_i32_0 = arith.constant 0 : i32
    %2 = arith.cmpi ne, %1, %c0_i32_0 : i32
    scf.if %2 {
      %c0_59 = arith.constant 0 : index
      %c0_60 = arith.constant 0 : index
      %97 = vector.load %arg3[%c0_59, %c0_60] : memref<8x128xf32, #tpu.memory_space<vmem>>, vector<8x128xf32>
      %c0_61 = arith.constant 0 : index
      %c0_62 = arith.constant 0 : index
      %98 = vector.load %arg9[%c0_61, %c0_62] : memref<8x128xf32, #tpu.memory_space<vmem>>, vector<8x128xf32>
      tpu.vector_store %arg9[%c0_61, %c0_62], %97 {strides = array<i32>} : memref<8x128xf32, #tpu.memory_space<vmem>>, vector<8x128xf32>,
    } else {
    }
    %c0 = arith.constant 0 : index
    %c0_1 = arith.constant 0 : index
    %c0_2 = arith.constant 0 : index
    %3 = vector.load %arg2[%c0, %c0_1, %c0_2] : memref<8x8x128xbf16, #tpu.memory_space<vmem>>, vector<8x8x128xbf16>
    %4 = vector.shape_cast %3 : vector<8x8x128xbf16> to vector<64x128xbf16>
    %c0_3 = arith.constant 0 : index
    %c0_4 = arith.constant 0 : index
    %5 = vector.load %arg4[%c0_3, %c0_4] : memref<128x128xbf16, #tpu.memory_space<vmem>>, vector<128x128xbf16>
    %cst = arith.constant dense<0.000000e+00> : vector<64x128xf32>
    %6 = tpu.matmul %4, %5, %cst {dimension_numbers = #tpu.dot_dimension_numbers<[1], [0], [0], [1], [0, 0, 1, 1], [], []>} : vector<64x128xbf16>, vector<128x128xbf16>, vector<64x128xf32> -> vector<64x128xf32>
    %c0_5 = arith.constant 0 : index
    %c0_6 = arith.constant 0 : index
    %7 = vector.load %arg6[%c0_5, %c0_6] : memref<1x128xf32, #tpu.memory_space<vmem>>, vector<1x128xf32>
    %8 = vector.broadcast %7 : vector<1x128xf32> to vector<64x128xf32>
    %9 = arith.addf %6, %8 : vector<64x128xf32>
    %c0_7 = arith.constant 0 : index
    %c0_8 = arith.constant 0 : index
    %10 = vector.load %arg10[%c0_7, %c0_8] : memref<64x128xf32, #tpu.memory_space<vmem>>, vector<64x128xf32>
    tpu.vector_store %arg10[%c0_7, %c0_8], %9 {strides = array<i32>} : memref<64x128xf32, #tpu.memory_space<vmem>>, vector<64x128xf32>,
    %c0_9 = arith.constant 0 : index
    %c0_10 = arith.constant 0 : index
    %11 = vector.load %arg5[%c0_9, %c0_10] : memref<128x128xbf16, #tpu.memory_space<vmem>>, vector<128x128xbf16>
    %c0_11 = arith.constant 0 : index
    %c0_12 = arith.constant 0 : index
    %12 = vector.load %arg9[%c0_11, %c0_12] : memref<8x128xf32, #tpu.memory_space<vmem>>, vector<8x128xf32>
    %c0_13 = arith.constant 0 : index
    %c0_14 = arith.constant 0 : index
    %13 = vector.load %arg10[%c0_13, %c0_14] : memref<64x128xf32, #tpu.memory_space<vmem>>, vector<8x128xf32>
    %14 = arith.truncf %12 : vector<8x128xf32> to vector<8x128xbf16>
    %cst_15 = arith.constant dense<0.000000e+00> : vector<8x128xf32>
    %15 = tpu.matmul %14, %11, %cst_15 {dimension_numbers = #tpu.dot_dimension_numbers<[1], [0], [0], [1], [0, 0, 1, 1], [], []>} : vector<8x128xbf16>, vector<128x128xbf16>, vector<8x128xf32> -> vector<8x128xf32>
    %16 = arith.addf %13, %15 : vector<8x128xf32>
    %cst_16 = arith.constant 0.000000e+00 : f32
    %17 = vector.broadcast %cst_16 : f32 to vector<8x128xf32>
    %18 = arith.maximumf %16, %17 : vector<8x128xf32>
    %19 = arith.truncf %18 : vector<8x128xf32> to vector<8x128xbf16>
    %c0_17 = arith.constant 0 : index
    %c0_18 = arith.constant 0 : index
    %c0_19 = arith.constant 0 : index
    %20 = vector.load %arg7[%c0_17, %c0_18, %c0_19] : memref<8x8x128xbf16, #tpu.memory_space<vmem>>, vector<1x8x128xbf16>
    %21 = vector.shape_cast %20 : vector<1x8x128xbf16> to vector<8x128xbf16>
    %22 = vector.shape_cast %19 : vector<8x128xbf16> to vector<1x8x128xbf16>
    tpu.vector_store %arg7[%c0_17, %c0_18, %c0_19], %22 {strides = array<i32>} : memref<8x8x128xbf16, #tpu.memory_space<vmem>>, vector<1x8x128xbf16>,
    %c8 = arith.constant 8 : index
    %c0_20 = arith.constant 0 : index
    %23 = vector.load %arg10[%c8, %c0_20] : memref<64x128xf32, #tpu.memory_space<vmem>>, vector<8x128xf32>
    %24 = arith.truncf %18 : vector<8x128xf32> to vector<8x128xbf16>
    %cst_21 = arith.constant dense<0.000000e+00> : vector<8x128xf32>
    %25 = tpu.matmul %24, %11, %cst_21 {dimension_numbers = #tpu.dot_dimension_numbers<[1], [0], [0], [1], [0, 0, 1, 1], [], []>} : vector<8x128xbf16>, vector<128x128xbf16>, vector<8x128xf32> -> vector<8x128xf32>
    %26 = arith.addf %23, %25 : vector<8x128xf32>
    %cst_22 = arith.constant 0.000000e+00 : f32
    %27 = vector.broadcast %cst_22 : f32 to vector<8x128xf32>
    %28 = arith.maximumf %26, %27 : vector<8x128xf32>
    %29 = arith.truncf %28 : vector<8x128xf32> to vector<8x128xbf16>
    %c1 = arith.constant 1 : index
    %c0_23 = arith.constant 0 : index
    %c0_24 = arith.constant 0 : index
    %30 = vector.load %arg7[%c1, %c0_23, %c0_24] : memref<8x8x128xbf16, #tpu.memory_space<vmem>>, vector<1x8x128xbf16>
    %31 = vector.shape_cast %30 : vector<1x8x128xbf16> to vector<8x128xbf16>
    %32 = vector.shape_cast %29 : vector<8x128xbf16> to vector<1x8x128xbf16>
    tpu.vector_store %arg7[%c1, %c0_23, %c0_24], %32 {strides = array<i32>} : memref<8x8x128xbf16, #tpu.memory_space<vmem>>, vector<1x8x128xbf16>,
    %c16 = arith.constant 16 : index
    %c0_25 = arith.constant 0 : index
    %33 = vector.load %arg10[%c16, %c0_25] : memref<64x128xf32, #tpu.memory_space<vmem>>, vector<8x128xf32>
    %34 = arith.truncf %28 : vector<8x128xf32> to vector<8x128xbf16>
    %cst_26 = arith.constant dense<0.000000e+00> : vector<8x128xf32>
    %35 = tpu.matmul %34, %11, %cst_26 {dimension_numbers = #tpu.dot_dimension_numbers<[1], [0], [0], [1], [0, 0, 1, 1], [], []>} : vector<8x128xbf16>, vector<128x128xbf16>, vector<8x128xf32> -> vector<8x128xf32>
    %36 = arith.addf %33, %35 : vector<8x128xf32>
    %cst_27 = arith.constant 0.000000e+00 : f32
    %37 = vector.broadcast %cst_27 : f32 to vector<8x128xf32>
    %38 = arith.maximumf %36, %37 : vector<8x128xf32>
    %39 = arith.truncf %38 : vector<8x128xf32> to vector<8x128xbf16>
    %c2 = arith.constant 2 : index
    %c0_28 = arith.constant 0 : index
    %c0_29 = arith.constant 0 : index
    %40 = vector.load %arg7[%c2, %c0_28, %c0_29] : memref<8x8x128xbf16, #tpu.memory_space<vmem>>, vector<1x8x128xbf16>
    %41 = vector.shape_cast %40 : vector<1x8x128xbf16> to vector<8x128xbf16>
    %42 = vector.shape_cast %39 : vector<8x128xbf16> to vector<1x8x128xbf16>
    tpu.vector_store %arg7[%c2, %c0_28, %c0_29], %42 {strides = array<i32>} : memref<8x8x128xbf16, #tpu.memory_space<vmem>>, vector<1x8x128xbf16>,
    %c24 = arith.constant 24 : index
    %c0_30 = arith.constant 0 : index
    %43 = vector.load %arg10[%c24, %c0_30] : memref<64x128xf32, #tpu.memory_space<vmem>>, vector<8x128xf32>
    %44 = arith.truncf %38 : vector<8x128xf32> to vector<8x128xbf16>
    %cst_31 = arith.constant dense<0.000000e+00> : vector<8x128xf32>
    %45 = tpu.matmul %44, %11, %cst_31 {dimension_numbers = #tpu.dot_dimension_numbers<[1], [0], [0], [1], [0, 0, 1, 1], [], []>} : vector<8x128xbf16>, vector<128x128xbf16>, vector<8x128xf32> -> vector<8x128xf32>
    %46 = arith.addf %43, %45 : vector<8x128xf32>
    %cst_32 = arith.constant 0.000000e+00 : f32
    %47 = vector.broadcast %cst_32 : f32 to vector<8x128xf32>
    %48 = arith.maximumf %46, %47 : vector<8x128xf32>
    %49 = arith.truncf %48 : vector<8x128xf32> to vector<8x128xbf16>
    %c3 = arith.constant 3 : index
    %c0_33 = arith.constant 0 : index
    %c0_34 = arith.constant 0 : index
    %50 = vector.load %arg7[%c3, %c0_33, %c0_34] : memref<8x8x128xbf16, #tpu.memory_space<vmem>>, vector<1x8x128xbf16>
    %51 = vector.shape_cast %50 : vector<1x8x128xbf16> to vector<8x128xbf16>
    %52 = vector.shape_cast %49 : vector<8x128xbf16> to vector<1x8x128xbf16>
    tpu.vector_store %arg7[%c3, %c0_33, %c0_34], %52 {strides = array<i32>} : memref<8x8x128xbf16, #tpu.memory_space<vmem>>, vector<1x8x128xbf16>,
    %c32 = arith.constant 32 : index
    %c0_35 = arith.constant 0 : index
    %53 = vector.load %arg10[%c32, %c0_35] : memref<64x128xf32, #tpu.memory_space<vmem>>, vector<8x128xf32>
    %54 = arith.truncf %48 : vector<8x128xf32> to vector<8x128xbf16>
    %cst_36 = arith.constant dense<0.000000e+00> : vector<8x128xf32>
    %55 = tpu.matmul %54, %11, %cst_36 {dimension_numbers = #tpu.dot_dimension_numbers<[1], [0], [0], [1], [0, 0, 1, 1], [], []>} : vector<8x128xbf16>, vector<128x128xbf16>, vector<8x128xf32> -> vector<8x128xf32>
    %56 = arith.addf %53, %55 : vector<8x128xf32>
    %cst_37 = arith.constant 0.000000e+00 : f32
    %57 = vector.broadcast %cst_37 : f32 to vector<8x128xf32>
    %58 = arith.maximumf %56, %57 : vector<8x128xf32>
    %59 = arith.truncf %58 : vector<8x128xf32> to vector<8x128xbf16>
    %c4 = arith.constant 4 : index
    %c0_38 = arith.constant 0 : index
    %c0_39 = arith.constant 0 : index
    %60 = vector.load %arg7[%c4, %c0_38, %c0_39] : memref<8x8x128xbf16, #tpu.memory_space<vmem>>, vector<1x8x128xbf16>
    %61 = vector.shape_cast %60 : vector<1x8x128xbf16> to vector<8x128xbf16>
    %62 = vector.shape_cast %59 : vector<8x128xbf16> to vector<1x8x128xbf16>
    tpu.vector_store %arg7[%c4, %c0_38, %c0_39], %62 {strides = array<i32>} : memref<8x8x128xbf16, #tpu.memory_space<vmem>>, vector<1x8x128xbf16>,
    %c40 = arith.constant 40 : index
    %c0_40 = arith.constant 0 : index
    %63 = vector.load %arg10[%c40, %c0_40] : memref<64x128xf32, #tpu.memory_space<vmem>>, vector<8x128xf32>
    %64 = arith.truncf %58 : vector<8x128xf32> to vector<8x128xbf16>
    %cst_41 = arith.constant dense<0.000000e+00> : vector<8x128xf32>
    %65 = tpu.matmul %64, %11, %cst_41 {dimension_numbers = #tpu.dot_dimension_numbers<[1], [0], [0], [1], [0, 0, 1, 1], [], []>} : vector<8x128xbf16>, vector<128x128xbf16>, vector<8x128xf32> -> vector<8x128xf32>
    %66 = arith.addf %63, %65 : vector<8x128xf32>
    %cst_42 = arith.constant 0.000000e+00 : f32
    %67 = vector.broadcast %cst_42 : f32 to vector<8x128xf32>
    %68 = arith.maximumf %66, %67 : vector<8x128xf32>
    %69 = arith.truncf %68 : vector<8x128xf32> to vector<8x128xbf16>
    %c5 = arith.constant 5 : index
    %c0_43 = arith.constant 0 : index
    %c0_44 = arith.constant 0 : index
    %70 = vector.load %arg7[%c5, %c0_43, %c0_44] : memref<8x8x128xbf16, #tpu.memory_space<vmem>>, vector<1x8x128xbf16>
    %71 = vector.shape_cast %70 : vector<1x8x128xbf16> to vector<8x128xbf16>
    %72 = vector.shape_cast %69 : vector<8x128xbf16> to vector<1x8x128xbf16>
    tpu.vector_store %arg7[%c5, %c0_43, %c0_44], %72 {strides = array<i32>} : memref<8x8x128xbf16, #tpu.memory_space<vmem>>, vector<1x8x128xbf16>,
    %c48 = arith.constant 48 : index
    %c0_45 = arith.constant 0 : index
    %73 = vector.load %arg10[%c48, %c0_45] : memref<64x128xf32, #tpu.memory_space<vmem>>, vector<8x128xf32>
    %74 = arith.truncf %68 : vector<8x128xf32> to vector<8x128xbf16>
    %cst_46 = arith.constant dense<0.000000e+00> : vector<8x128xf32>
    %75 = tpu.matmul %74, %11, %cst_46 {dimension_numbers = #tpu.dot_dimension_numbers<[1], [0], [0], [1], [0, 0, 1, 1], [], []>} : vector<8x128xbf16>, vector<128x128xbf16>, vector<8x128xf32> -> vector<8x128xf32>
    %76 = arith.addf %73, %75 : vector<8x128xf32>
    %cst_47 = arith.constant 0.000000e+00 : f32
    %77 = vector.broadcast %cst_47 : f32 to vector<8x128xf32>
    %78 = arith.maximumf %76, %77 : vector<8x128xf32>
    %79 = arith.truncf %78 : vector<8x128xf32> to vector<8x128xbf16>
    %c6 = arith.constant 6 : index
    %c0_48 = arith.constant 0 : index
    %c0_49 = arith.constant 0 : index
    %80 = vector.load %arg7[%c6, %c0_48, %c0_49] : memref<8x8x128xbf16, #tpu.memory_space<vmem>>, vector<1x8x128xbf16>
    %81 = vector.shape_cast %80 : vector<1x8x128xbf16> to vector<8x128xbf16>
    %82 = vector.shape_cast %79 : vector<8x128xbf16> to vector<1x8x128xbf16>
    tpu.vector_store %arg7[%c6, %c0_48, %c0_49], %82 {strides = array<i32>} : memref<8x8x128xbf16, #tpu.memory_space<vmem>>, vector<1x8x128xbf16>,
    %c56 = arith.constant 56 : index
    %c0_50 = arith.constant 0 : index
    %83 = vector.load %arg10[%c56, %c0_50] : memref<64x128xf32, #tpu.memory_space<vmem>>, vector<8x128xf32>
    %84 = arith.truncf %78 : vector<8x128xf32> to vector<8x128xbf16>
    %cst_51 = arith.constant dense<0.000000e+00> : vector<8x128xf32>
    %85 = tpu.matmul %84, %11, %cst_51 {dimension_numbers = #tpu.dot_dimension_numbers<[1], [0], [0], [1], [0, 0, 1, 1], [], []>} : vector<8x128xbf16>, vector<128x128xbf16>, vector<8x128xf32> -> vector<8x128xf32>
    %86 = arith.addf %83, %85 : vector<8x128xf32>
    %cst_52 = arith.constant 0.000000e+00 : f32
    %87 = vector.broadcast %cst_52 : f32 to vector<8x128xf32>
    %88 = arith.maximumf %86, %87 : vector<8x128xf32>
    %89 = arith.truncf %88 : vector<8x128xf32> to vector<8x128xbf16>
    %c7 = arith.constant 7 : index
    %c0_53 = arith.constant 0 : index
    %c0_54 = arith.constant 0 : index
    %90 = vector.load %arg7[%c7, %c0_53, %c0_54] : memref<8x8x128xbf16, #tpu.memory_space<vmem>>, vector<1x8x128xbf16>
    %91 = vector.shape_cast %90 : vector<1x8x128xbf16> to vector<8x128xbf16>
    %92 = vector.shape_cast %89 : vector<8x128xbf16> to vector<1x8x128xbf16>
    tpu.vector_store %arg7[%c7, %c0_53, %c0_54], %92 {strides = array<i32>} : memref<8x8x128xbf16, #tpu.memory_space<vmem>>, vector<1x8x128xbf16>,
    %c0_55 = arith.constant 0 : index
    %c0_56 = arith.constant 0 : index
    %93 = vector.load %arg9[%c0_55, %c0_56] : memref<8x128xf32, #tpu.memory_space<vmem>>, vector<8x128xf32>
    tpu.vector_store %arg9[%c0_55, %c0_56], %88 {strides = array<i32>} : memref<8x128xf32, #tpu.memory_space<vmem>>, vector<8x128xf32>,
    %c0_i32_57 = arith.constant 0 : i32
    %94 = arith.cmpi eq, %arg1, %c0_i32_57 : i32
    %95 = arith.extui %94 : i1 to i32
    %c0_i32_58 = arith.constant 0 : i32
    %96 = arith.cmpi ne, %95, %c0_i32_58 : i32
    scf.if %96 {
      %c0_59 = arith.constant 0 : index
      %c0_60 = arith.constant 0 : index
      %97 = vector.load %arg8[%c0_59, %c0_60] : memref<8x128xf32, #tpu.memory_space<vmem>>, vector<8x128xf32>
      tpu.vector_store %arg8[%c0_59, %c0_60], %88 {strides = array<i32>} : memref<8x128xf32, #tpu.memory_space<vmem>>, vector<8x128xf32>,
    } else {
    }
    return
  }
  func.func @transform_0(%arg0: i32, %arg1: i32) -> (i32, i32, i32) {
    %c0_i32 = arith.constant 0 : i32
    %c0_i32_0 = arith.constant 0 : i32
    return %arg1, %arg0, %c0_i32 : i32, i32, i32
  }
  func.func @transform_1(%arg0: i32, %arg1: i32) -> (i32, i32) {
    %c0_i32 = arith.constant 0 : i32
    %c0_i32_0 = arith.constant 0 : i32
    return %arg0, %c0_i32 : i32, i32
  }
  func.func @transform_2(%arg0: i32, %arg1: i32) -> (i32, i32) {
    %c0_i32 = arith.constant 0 : i32
    %c0_i32_0 = arith.constant 0 : i32
    %c0_i32_1 = arith.constant 0 : i32
    return %c0_i32, %c0_i32_0 : i32, i32
  }
  func.func @transform_3(%arg0: i32, %arg1: i32) -> (i32, i32) {
    %c0_i32 = arith.constant 0 : i32
    %c0_i32_0 = arith.constant 0 : i32
    %c0_i32_1 = arith.constant 0 : i32
    return %c0_i32, %c0_i32_0 : i32, i32
  }
  func.func @transform_4(%arg0: i32, %arg1: i32) -> (i32, i32) {
    %c0_i32 = arith.constant 0 : i32
    %c0_i32_0 = arith.constant 0 : i32
    %c0_i32_1 = arith.constant 0 : i32
    return %c0_i32, %c0_i32_0 : i32, i32
  }
  func.func @transform_5(%arg0: i32, %arg1: i32) -> (i32, i32, i32) {
    %c0_i32 = arith.constant 0 : i32
    %c0_i32_0 = arith.constant 0 : i32
    return %arg1, %arg0, %c0_i32 : i32, i32, i32
  }
  func.func @transform_6(%arg0: i32, %arg1: i32) -> (i32, i32) {
    %c0_i32 = arith.constant 0 : i32
    %c0_i32_0 = arith.constant 0 : i32
    return %arg0, %c0_i32 : i32, i32
  }
}

module attributes {stable_mosaic.version = 11 : i64} {
  func.func @_rnn_layer_fc_kernel(%arg0: i32, %arg1: i32, %arg2: memref<8x8x128xbf16, #tpu.memory_space<vmem>>, %arg3: memref<8x128xf32, #tpu.memory_space<vmem>>, %arg4: memref<128x128xbf16, #tpu.memory_space<vmem>>, %arg5: memref<128x128xbf16, #tpu.memory_space<vmem>>, %arg6: memref<1x128xf32, #tpu.memory_space<vmem>>, %arg7: memref<128x128xbf16, #tpu.memory_space<vmem>>, %arg8: memref<1x128xf32, #tpu.memory_space<vmem>>, %arg9: memref<8x8x128xf32, #tpu.memory_space<vmem>>, %arg10: memref<8x128xf32, #tpu.memory_space<vmem>>, %arg11: memref<8x128xf32, #tpu.memory_space<vmem>>, %arg12: memref<64x128xf32, #tpu.memory_space<vmem>>, %arg13: memref<64x128xbf16, #tpu.memory_space<vmem>>) attributes {dimension_semantics = [#tpu.dimension_semantics<parallel>, #tpu.dimension_semantics<arbitrary>], iteration_bounds = array<i64: 1, 1>, scalar_prefetch = 0 : i64, scratch_operands = 3 : i64, tpu.core_type = #tpu.core_type<tc>, window_params = [{transform_indices = @transform_0, window_bounds = array<i64: 8, 8, 128>}, {transform_indices = @transform_1, window_bounds = array<i64: 8, 128>}, {pipeline_mode = #tpu.pipeline_mode<synchronous>, transform_indices = @transform_2, window_bounds = array<i64: 128, 128>}, {pipeline_mode = #tpu.pipeline_mode<synchronous>, transform_indices = @transform_3, window_bounds = array<i64: 128, 128>}, {pipeline_mode = #tpu.pipeline_mode<synchronous>, transform_indices = @transform_4, window_bounds = array<i64: 1, 128>}, {pipeline_mode = #tpu.pipeline_mode<synchronous>, transform_indices = @transform_5, window_bounds = array<i64: 128, 128>}, {pipeline_mode = #tpu.pipeline_mode<synchronous>, transform_indices = @transform_6, window_bounds = array<i64: 1, 128>}, {transform_indices = @transform_7, window_bounds = array<i64: 8, 8, 128>}, {transform_indices = @transform_8, window_bounds = array<i64: 8, 128>}]} {
    %c0_i32 = arith.constant 0 : i32
    %0 = arith.cmpi eq, %arg1, %c0_i32 : i32
    %1 = arith.extui %0 : i1 to i32
    %c0_i32_0 = arith.constant 0 : i32
    %2 = arith.cmpi ne, %1, %c0_i32_0 : i32
    scf.if %2 {
      %c0_82 = arith.constant 0 : index
      %c0_83 = arith.constant 0 : index
      %119 = vector.load %arg3[%c0_82, %c0_83] : memref<8x128xf32, #tpu.memory_space<vmem>>, vector<8x128xf32>
      %c0_84 = arith.constant 0 : index
      %c0_85 = arith.constant 0 : index
      %120 = vector.load %arg11[%c0_84, %c0_85] : memref<8x128xf32, #tpu.memory_space<vmem>>, vector<8x128xf32>
      tpu.vector_store %arg11[%c0_84, %c0_85], %119 {strides = array<i32>} : memref<8x128xf32, #tpu.memory_space<vmem>>, vector<8x128xf32>,
    } else {
    }
    %c0 = arith.constant 0 : index
    %c0_1 = arith.constant 0 : index
    %c0_2 = arith.constant 0 : index
    %3 = vector.load %arg2[%c0, %c0_1, %c0_2] : memref<8x8x128xbf16, #tpu.memory_space<vmem>>, vector<8x8x128xbf16>
    %4 = vector.shape_cast %3 : vector<8x8x128xbf16> to vector<64x128xbf16>
    %c0_3 = arith.constant 0 : index
    %c0_4 = arith.constant 0 : index
    %5 = vector.load %arg4[%c0_3, %c0_4] : memref<128x128xbf16, #tpu.memory_space<vmem>>, vector<128x128xbf16>
    %cst = arith.constant dense<0.000000e+00> : vector<64x128xf32>
    %6 = tpu.matmul %4, %5, %cst {dimension_numbers = #tpu.dot_dimension_numbers<[1], [0], [0], [1], [0, 0, 1, 1], [], []>} : vector<64x128xbf16>, vector<128x128xbf16>, vector<64x128xf32> -> vector<64x128xf32>
    %c0_5 = arith.constant 0 : index
    %c0_6 = arith.constant 0 : index
    %7 = vector.load %arg6[%c0_5, %c0_6] : memref<1x128xf32, #tpu.memory_space<vmem>>, vector<1x128xf32>
    %8 = vector.broadcast %7 : vector<1x128xf32> to vector<64x128xf32>
    %9 = arith.addf %6, %8 : vector<64x128xf32>
    %c0_7 = arith.constant 0 : index
    %c0_8 = arith.constant 0 : index
    %10 = vector.load %arg12[%c0_7, %c0_8] : memref<64x128xf32, #tpu.memory_space<vmem>>, vector<64x128xf32>
    tpu.vector_store %arg12[%c0_7, %c0_8], %9 {strides = array<i32>} : memref<64x128xf32, #tpu.memory_space<vmem>>, vector<64x128xf32>,
    %c0_9 = arith.constant 0 : index
    %c0_10 = arith.constant 0 : index
    %11 = vector.load %arg5[%c0_9, %c0_10] : memref<128x128xbf16, #tpu.memory_space<vmem>>, vector<128x128xbf16>
    %c0_11 = arith.constant 0 : index
    %c0_12 = arith.constant 0 : index
    %12 = vector.load %arg11[%c0_11, %c0_12] : memref<8x128xf32, #tpu.memory_space<vmem>>, vector<8x128xf32>
    %c0_13 = arith.constant 0 : index
    %c0_14 = arith.constant 0 : index
    %13 = vector.load %arg12[%c0_13, %c0_14] : memref<64x128xf32, #tpu.memory_space<vmem>>, vector<8x128xf32>
    %14 = arith.truncf %12 : vector<8x128xf32> to vector<8x128xbf16>
    %cst_15 = arith.constant dense<0.000000e+00> : vector<8x128xf32>
    %15 = tpu.matmul %14, %11, %cst_15 {dimension_numbers = #tpu.dot_dimension_numbers<[1], [0], [0], [1], [0, 0, 1, 1], [], []>} : vector<8x128xbf16>, vector<128x128xbf16>, vector<8x128xf32> -> vector<8x128xf32>
    %16 = arith.addf %13, %15 : vector<8x128xf32>
    %cst_16 = arith.constant 0.000000e+00 : f32
    %17 = vector.broadcast %cst_16 : f32 to vector<8x128xf32>
    %18 = arith.maximumf %16, %17 : vector<8x128xf32>
    %19 = arith.truncf %18 : vector<8x128xf32> to vector<8x128xbf16>
    %c0_17 = arith.constant 0 : index
    %c0_18 = arith.constant 0 : index
    %20 = vector.load %arg13[%c0_17, %c0_18] : memref<64x128xbf16, #tpu.memory_space<vmem>>, vector<8x128xbf16>
    tpu.vector_store %arg13[%c0_17, %c0_18], %19 {strides = array<i32>} : memref<64x128xbf16, #tpu.memory_space<vmem>>, vector<8x128xbf16>,
    %c8 = arith.constant 8 : index
    %c0_19 = arith.constant 0 : index
    %21 = vector.load %arg12[%c8, %c0_19] : memref<64x128xf32, #tpu.memory_space<vmem>>, vector<8x128xf32>
    %22 = arith.truncf %18 : vector<8x128xf32> to vector<8x128xbf16>
    %cst_20 = arith.constant dense<0.000000e+00> : vector<8x128xf32>
    %23 = tpu.matmul %22, %11, %cst_20 {dimension_numbers = #tpu.dot_dimension_numbers<[1], [0], [0], [1], [0, 0, 1, 1], [], []>} : vector<8x128xbf16>, vector<128x128xbf16>, vector<8x128xf32> -> vector<8x128xf32>
    %24 = arith.addf %21, %23 : vector<8x128xf32>
    %cst_21 = arith.constant 0.000000e+00 : f32
    %25 = vector.broadcast %cst_21 : f32 to vector<8x128xf32>
    %26 = arith.maximumf %24, %25 : vector<8x128xf32>
    %27 = arith.truncf %26 : vector<8x128xf32> to vector<8x128xbf16>
    %c8_22 = arith.constant 8 : index
    %c0_23 = arith.constant 0 : index
    %28 = vector.load %arg13[%c8_22, %c0_23] : memref<64x128xbf16, #tpu.memory_space<vmem>>, vector<8x128xbf16>
    tpu.vector_store %arg13[%c8_22, %c0_23], %27 {strides = array<i32>} : memref<64x128xbf16, #tpu.memory_space<vmem>>, vector<8x128xbf16>,
    %c16 = arith.constant 16 : index
    %c0_24 = arith.constant 0 : index
    %29 = vector.load %arg12[%c16, %c0_24] : memref<64x128xf32, #tpu.memory_space<vmem>>, vector<8x128xf32>
    %30 = arith.truncf %26 : vector<8x128xf32> to vector<8x128xbf16>
    %cst_25 = arith.constant dense<0.000000e+00> : vector<8x128xf32>
    %31 = tpu.matmul %30, %11, %cst_25 {dimension_numbers = #tpu.dot_dimension_numbers<[1], [0], [0], [1], [0, 0, 1, 1], [], []>} : vector<8x128xbf16>, vector<128x128xbf16>, vector<8x128xf32> -> vector<8x128xf32>
    %32 = arith.addf %29, %31 : vector<8x128xf32>
    %cst_26 = arith.constant 0.000000e+00 : f32
    %33 = vector.broadcast %cst_26 : f32 to vector<8x128xf32>
    %34 = arith.maximumf %32, %33 : vector<8x128xf32>
    %35 = arith.truncf %34 : vector<8x128xf32> to vector<8x128xbf16>
    %c16_27 = arith.constant 16 : index
    %c0_28 = arith.constant 0 : index
    %36 = vector.load %arg13[%c16_27, %c0_28] : memref<64x128xbf16, #tpu.memory_space<vmem>>, vector<8x128xbf16>
    tpu.vector_store %arg13[%c16_27, %c0_28], %35 {strides = array<i32>} : memref<64x128xbf16, #tpu.memory_space<vmem>>, vector<8x128xbf16>,
    %c24 = arith.constant 24 : index
    %c0_29 = arith.constant 0 : index
    %37 = vector.load %arg12[%c24, %c0_29] : memref<64x128xf32, #tpu.memory_space<vmem>>, vector<8x128xf32>
    %38 = arith.truncf %34 : vector<8x128xf32> to vector<8x128xbf16>
    %cst_30 = arith.constant dense<0.000000e+00> : vector<8x128xf32>
    %39 = tpu.matmul %38, %11, %cst_30 {dimension_numbers = #tpu.dot_dimension_numbers<[1], [0], [0], [1], [0, 0, 1, 1], [], []>} : vector<8x128xbf16>, vector<128x128xbf16>, vector<8x128xf32> -> vector<8x128xf32>
    %40 = arith.addf %37, %39 : vector<8x128xf32>
    %cst_31 = arith.constant 0.000000e+00 : f32
    %41 = vector.broadcast %cst_31 : f32 to vector<8x128xf32>
    %42 = arith.maximumf %40, %41 : vector<8x128xf32>
    %43 = arith.truncf %42 : vector<8x128xf32> to vector<8x128xbf16>
    %c24_32 = arith.constant 24 : index
    %c0_33 = arith.constant 0 : index
    %44 = vector.load %arg13[%c24_32, %c0_33] : memref<64x128xbf16, #tpu.memory_space<vmem>>, vector<8x128xbf16>
    tpu.vector_store %arg13[%c24_32, %c0_33], %43 {strides = array<i32>} : memref<64x128xbf16, #tpu.memory_space<vmem>>, vector<8x128xbf16>,
    %c32 = arith.constant 32 : index
    %c0_34 = arith.constant 0 : index
    %45 = vector.load %arg12[%c32, %c0_34] : memref<64x128xf32, #tpu.memory_space<vmem>>, vector<8x128xf32>
    %46 = arith.truncf %42 : vector<8x128xf32> to vector<8x128xbf16>
    %cst_35 = arith.constant dense<0.000000e+00> : vector<8x128xf32>
    %47 = tpu.matmul %46, %11, %cst_35 {dimension_numbers = #tpu.dot_dimension_numbers<[1], [0], [0], [1], [0, 0, 1, 1], [], []>} : vector<8x128xbf16>, vector<128x128xbf16>, vector<8x128xf32> -> vector<8x128xf32>
    %48 = arith.addf %45, %47 : vector<8x128xf32>
    %cst_36 = arith.constant 0.000000e+00 : f32
    %49 = vector.broadcast %cst_36 : f32 to vector<8x128xf32>
    %50 = arith.maximumf %48, %49 : vector<8x128xf32>
    %51 = arith.truncf %50 : vector<8x128xf32> to vector<8x128xbf16>
    %c32_37 = arith.constant 32 : index
    %c0_38 = arith.constant 0 : index
    %52 = vector.load %arg13[%c32_37, %c0_38] : memref<64x128xbf16, #tpu.memory_space<vmem>>, vector<8x128xbf16>
    tpu.vector_store %arg13[%c32_37, %c0_38], %51 {strides = array<i32>} : memref<64x128xbf16, #tpu.memory_space<vmem>>, vector<8x128xbf16>,
    %c40 = arith.constant 40 : index
    %c0_39 = arith.constant 0 : index
    %53 = vector.load %arg12[%c40, %c0_39] : memref<64x128xf32, #tpu.memory_space<vmem>>, vector<8x128xf32>
    %54 = arith.truncf %50 : vector<8x128xf32> to vector<8x128xbf16>
    %cst_40 = arith.constant dense<0.000000e+00> : vector<8x128xf32>
    %55 = tpu.matmul %54, %11, %cst_40 {dimension_numbers = #tpu.dot_dimension_numbers<[1], [0], [0], [1], [0, 0, 1, 1], [], []>} : vector<8x128xbf16>, vector<128x128xbf16>, vector<8x128xf32> -> vector<8x128xf32>
    %56 = arith.addf %53, %55 : vector<8x128xf32>
    %cst_41 = arith.constant 0.000000e+00 : f32
    %57 = vector.broadcast %cst_41 : f32 to vector<8x128xf32>
    %58 = arith.maximumf %56, %57 : vector<8x128xf32>
    %59 = arith.truncf %58 : vector<8x128xf32> to vector<8x128xbf16>
    %c40_42 = arith.constant 40 : index
    %c0_43 = arith.constant 0 : index
    %60 = vector.load %arg13[%c40_42, %c0_43] : memref<64x128xbf16, #tpu.memory_space<vmem>>, vector<8x128xbf16>
    tpu.vector_store %arg13[%c40_42, %c0_43], %59 {strides = array<i32>} : memref<64x128xbf16, #tpu.memory_space<vmem>>, vector<8x128xbf16>,
    %c48 = arith.constant 48 : index
    %c0_44 = arith.constant 0 : index
    %61 = vector.load %arg12[%c48, %c0_44] : memref<64x128xf32, #tpu.memory_space<vmem>>, vector<8x128xf32>
    %62 = arith.truncf %58 : vector<8x128xf32> to vector<8x128xbf16>
    %cst_45 = arith.constant dense<0.000000e+00> : vector<8x128xf32>
    %63 = tpu.matmul %62, %11, %cst_45 {dimension_numbers = #tpu.dot_dimension_numbers<[1], [0], [0], [1], [0, 0, 1, 1], [], []>} : vector<8x128xbf16>, vector<128x128xbf16>, vector<8x128xf32> -> vector<8x128xf32>
    %64 = arith.addf %61, %63 : vector<8x128xf32>
    %cst_46 = arith.constant 0.000000e+00 : f32
    %65 = vector.broadcast %cst_46 : f32 to vector<8x128xf32>
    %66 = arith.maximumf %64, %65 : vector<8x128xf32>
    %67 = arith.truncf %66 : vector<8x128xf32> to vector<8x128xbf16>
    %c48_47 = arith.constant 48 : index
    %c0_48 = arith.constant 0 : index
    %68 = vector.load %arg13[%c48_47, %c0_48] : memref<64x128xbf16, #tpu.memory_space<vmem>>, vector<8x128xbf16>
    tpu.vector_store %arg13[%c48_47, %c0_48], %67 {strides = array<i32>} : memref<64x128xbf16, #tpu.memory_space<vmem>>, vector<8x128xbf16>,
    %c56 = arith.constant 56 : index
    %c0_49 = arith.constant 0 : index
    %69 = vector.load %arg12[%c56, %c0_49] : memref<64x128xf32, #tpu.memory_space<vmem>>, vector<8x128xf32>
    %70 = arith.truncf %66 : vector<8x128xf32> to vector<8x128xbf16>
    %cst_50 = arith.constant dense<0.000000e+00> : vector<8x128xf32>
    %71 = tpu.matmul %70, %11, %cst_50 {dimension_numbers = #tpu.dot_dimension_numbers<[1], [0], [0], [1], [0, 0, 1, 1], [], []>} : vector<8x128xbf16>, vector<128x128xbf16>, vector<8x128xf32> -> vector<8x128xf32>
    %72 = arith.addf %69, %71 : vector<8x128xf32>
    %cst_51 = arith.constant 0.000000e+00 : f32
    %73 = vector.broadcast %cst_51 : f32 to vector<8x128xf32>
    %74 = arith.maximumf %72, %73 : vector<8x128xf32>
    %75 = arith.truncf %74 : vector<8x128xf32> to vector<8x128xbf16>
    %c56_52 = arith.constant 56 : index
    %c0_53 = arith.constant 0 : index
    %76 = vector.load %arg13[%c56_52, %c0_53] : memref<64x128xbf16, #tpu.memory_space<vmem>>, vector<8x128xbf16>
    tpu.vector_store %arg13[%c56_52, %c0_53], %75 {strides = array<i32>} : memref<64x128xbf16, #tpu.memory_space<vmem>>, vector<8x128xbf16>,
    %c0_54 = arith.constant 0 : index
    %c0_55 = arith.constant 0 : index
    %77 = vector.load %arg11[%c0_54, %c0_55] : memref<8x128xf32, #tpu.memory_space<vmem>>, vector<8x128xf32>
    tpu.vector_store %arg11[%c0_54, %c0_55], %74 {strides = array<i32>} : memref<8x128xf32, #tpu.memory_space<vmem>>, vector<8x128xf32>,
    %c0_56 = arith.constant 0 : index
    %c0_57 = arith.constant 0 : index
    %78 = vector.load %arg13[%c0_56, %c0_57] : memref<64x128xbf16, #tpu.memory_space<vmem>>, vector<64x128xbf16>
    %c0_58 = arith.constant 0 : index
    %c0_59 = arith.constant 0 : index
    %79 = vector.load %arg7[%c0_58, %c0_59] : memref<128x128xbf16, #tpu.memory_space<vmem>>, vector<128x128xbf16>
    %cst_60 = arith.constant dense<0.000000e+00> : vector<64x128xf32>
    %80 = tpu.matmul %78, %79, %cst_60 {dimension_numbers = #tpu.dot_dimension_numbers<[1], [0], [0], [1], [0, 0, 1, 1], [], []>} : vector<64x128xbf16>, vector<128x128xbf16>, vector<64x128xf32> -> vector<64x128xf32>
    %c0_61 = arith.constant 0 : index
    %c0_62 = arith.constant 0 : index
    %81 = vector.load %arg8[%c0_61, %c0_62] : memref<1x128xf32, #tpu.memory_space<vmem>>, vector<1x128xf32>
    %82 = vector.broadcast %81 : vector<1x128xf32> to vector<64x128xf32>
    %83 = arith.addf %80, %82 : vector<64x128xf32>
    %84 = vector.extract_strided_slice %83 {offsets = [0, 0], sizes = [8, 128], strides = [1, 1]} : vector<64x128xf32> to vector<8x128xf32>
    %c0_63 = arith.constant 0 : index
    %c0_64 = arith.constant 0 : index
    %c0_65 = arith.constant 0 : index
    %85 = vector.load %arg9[%c0_63, %c0_64, %c0_65] : memref<8x8x128xf32, #tpu.memory_space<vmem>>, vector<1x8x128xf32>
    %86 = vector.shape_cast %85 : vector<1x8x128xf32> to vector<8x128xf32>
    %87 = vector.shape_cast %84 : vector<8x128xf32> to vector<1x8x128xf32>
    tpu.vector_store %arg9[%c0_63, %c0_64, %c0_65], %87 {strides = array<i32>} : memref<8x8x128xf32, #tpu.memory_space<vmem>>, vector<1x8x128xf32>,
    %88 = vector.extract_strided_slice %83 {offsets = [8, 0], sizes = [8, 128], strides = [1, 1]} : vector<64x128xf32> to vector<8x128xf32>
    %c1 = arith.constant 1 : index
    %c0_66 = arith.constant 0 : index
    %c0_67 = arith.constant 0 : index
    %89 = vector.load %arg9[%c1, %c0_66, %c0_67] : memref<8x8x128xf32, #tpu.memory_space<vmem>>, vector<1x8x128xf32>
    %90 = vector.shape_cast %89 : vector<1x8x128xf32> to vector<8x128xf32>
    %91 = vector.shape_cast %88 : vector<8x128xf32> to vector<1x8x128xf32>
    tpu.vector_store %arg9[%c1, %c0_66, %c0_67], %91 {strides = array<i32>} : memref<8x8x128xf32, #tpu.memory_space<vmem>>, vector<1x8x128xf32>,
    %92 = vector.extract_strided_slice %83 {offsets = [16, 0], sizes = [8, 128], strides = [1, 1]} : vector<64x128xf32> to vector<8x128xf32>
    %c2 = arith.constant 2 : index
    %c0_68 = arith.constant 0 : index
    %c0_69 = arith.constant 0 : index
    %93 = vector.load %arg9[%c2, %c0_68, %c0_69] : memref<8x8x128xf32, #tpu.memory_space<vmem>>, vector<1x8x128xf32>
    %94 = vector.shape_cast %93 : vector<1x8x128xf32> to vector<8x128xf32>
    %95 = vector.shape_cast %92 : vector<8x128xf32> to vector<1x8x128xf32>
    tpu.vector_store %arg9[%c2, %c0_68, %c0_69], %95 {strides = array<i32>} : memref<8x8x128xf32, #tpu.memory_space<vmem>>, vector<1x8x128xf32>,
    %96 = vector.extract_strided_slice %83 {offsets = [24, 0], sizes = [8, 128], strides = [1, 1]} : vector<64x128xf32> to vector<8x128xf32>
    %c3 = arith.constant 3 : index
    %c0_70 = arith.constant 0 : index
    %c0_71 = arith.constant 0 : index
    %97 = vector.load %arg9[%c3, %c0_70, %c0_71] : memref<8x8x128xf32, #tpu.memory_space<vmem>>, vector<1x8x128xf32>
    %98 = vector.shape_cast %97 : vector<1x8x128xf32> to vector<8x128xf32>
    %99 = vector.shape_cast %96 : vector<8x128xf32> to vector<1x8x128xf32>
    tpu.vector_store %arg9[%c3, %c0_70, %c0_71], %99 {strides = array<i32>} : memref<8x8x128xf32, #tpu.memory_space<vmem>>, vector<1x8x128xf32>,
    %100 = vector.extract_strided_slice %83 {offsets = [32, 0], sizes = [8, 128], strides = [1, 1]} : vector<64x128xf32> to vector<8x128xf32>
    %c4 = arith.constant 4 : index
    %c0_72 = arith.constant 0 : index
    %c0_73 = arith.constant 0 : index
    %101 = vector.load %arg9[%c4, %c0_72, %c0_73] : memref<8x8x128xf32, #tpu.memory_space<vmem>>, vector<1x8x128xf32>
    %102 = vector.shape_cast %101 : vector<1x8x128xf32> to vector<8x128xf32>
    %103 = vector.shape_cast %100 : vector<8x128xf32> to vector<1x8x128xf32>
    tpu.vector_store %arg9[%c4, %c0_72, %c0_73], %103 {strides = array<i32>} : memref<8x8x128xf32, #tpu.memory_space<vmem>>, vector<1x8x128xf32>,
    %104 = vector.extract_strided_slice %83 {offsets = [40, 0], sizes = [8, 128], strides = [1, 1]} : vector<64x128xf32> to vector<8x128xf32>
    %c5 = arith.constant 5 : index
    %c0_74 = arith.constant 0 : index
    %c0_75 = arith.constant 0 : index
    %105 = vector.load %arg9[%c5, %c0_74, %c0_75] : memref<8x8x128xf32, #tpu.memory_space<vmem>>, vector<1x8x128xf32>
    %106 = vector.shape_cast %105 : vector<1x8x128xf32> to vector<8x128xf32>
    %107 = vector.shape_cast %104 : vector<8x128xf32> to vector<1x8x128xf32>
    tpu.vector_store %arg9[%c5, %c0_74, %c0_75], %107 {strides = array<i32>} : memref<8x8x128xf32, #tpu.memory_space<vmem>>, vector<1x8x128xf32>,
    %108 = vector.extract_strided_slice %83 {offsets = [48, 0], sizes = [8, 128], strides = [1, 1]} : vector<64x128xf32> to vector<8x128xf32>
    %c6 = arith.constant 6 : index
    %c0_76 = arith.constant 0 : index
    %c0_77 = arith.constant 0 : index
    %109 = vector.load %arg9[%c6, %c0_76, %c0_77] : memref<8x8x128xf32, #tpu.memory_space<vmem>>, vector<1x8x128xf32>
    %110 = vector.shape_cast %109 : vector<1x8x128xf32> to vector<8x128xf32>
    %111 = vector.shape_cast %108 : vector<8x128xf32> to vector<1x8x128xf32>
    tpu.vector_store %arg9[%c6, %c0_76, %c0_77], %111 {strides = array<i32>} : memref<8x8x128xf32, #tpu.memory_space<vmem>>, vector<1x8x128xf32>,
    %112 = vector.extract_strided_slice %83 {offsets = [56, 0], sizes = [8, 128], strides = [1, 1]} : vector<64x128xf32> to vector<8x128xf32>
    %c7 = arith.constant 7 : index
    %c0_78 = arith.constant 0 : index
    %c0_79 = arith.constant 0 : index
    %113 = vector.load %arg9[%c7, %c0_78, %c0_79] : memref<8x8x128xf32, #tpu.memory_space<vmem>>, vector<1x8x128xf32>
    %114 = vector.shape_cast %113 : vector<1x8x128xf32> to vector<8x128xf32>
    %115 = vector.shape_cast %112 : vector<8x128xf32> to vector<1x8x128xf32>
    tpu.vector_store %arg9[%c7, %c0_78, %c0_79], %115 {strides = array<i32>} : memref<8x8x128xf32, #tpu.memory_space<vmem>>, vector<1x8x128xf32>,
    %c0_i32_80 = arith.constant 0 : i32
    %116 = arith.cmpi eq, %arg1, %c0_i32_80 : i32
    %117 = arith.extui %116 : i1 to i32
    %c0_i32_81 = arith.constant 0 : i32
    %118 = arith.cmpi ne, %117, %c0_i32_81 : i32
    scf.if %118 {
      %c0_82 = arith.constant 0 : index
      %c0_83 = arith.constant 0 : index
      %119 = vector.load %arg10[%c0_82, %c0_83] : memref<8x128xf32, #tpu.memory_space<vmem>>, vector<8x128xf32>
      tpu.vector_store %arg10[%c0_82, %c0_83], %74 {strides = array<i32>} : memref<8x128xf32, #tpu.memory_space<vmem>>, vector<8x128xf32>,
    } else {
    }
    return
  }
  func.func @transform_0(%arg0: i32, %arg1: i32) -> (i32, i32, i32) {
    %c0_i32 = arith.constant 0 : i32
    %c0_i32_0 = arith.constant 0 : i32
    return %arg1, %arg0, %c0_i32 : i32, i32, i32
  }
  func.func @transform_1(%arg0: i32, %arg1: i32) -> (i32, i32) {
    %c0_i32 = arith.constant 0 : i32
    %c0_i32_0 = arith.constant 0 : i32
    return %arg0, %c0_i32 : i32, i32
  }
  func.func @transform_2(%arg0: i32, %arg1: i32) -> (i32, i32) {
    %c0_i32 = arith.constant 0 : i32
    %c0_i32_0 = arith.constant 0 : i32
    %c0_i32_1 = arith.constant 0 : i32
    return %c0_i32, %c0_i32_0 : i32, i32
  }
  func.func @transform_3(%arg0: i32, %arg1: i32) -> (i32, i32) {
    %c0_i32 = arith.constant 0 : i32
    %c0_i32_0 = arith.constant 0 : i32
    %c0_i32_1 = arith.constant 0 : i32
    return %c0_i32, %c0_i32_0 : i32, i32
  }
  func.func @transform_4(%arg0: i32, %arg1: i32) -> (i32, i32) {
    %c0_i32 = arith.constant 0 : i32
    %c0_i32_0 = arith.constant 0 : i32
    %c0_i32_1 = arith.constant 0 : i32
    return %c0_i32, %c0_i32_0 : i32, i32
  }
  func.func @transform_5(%arg0: i32, %arg1: i32) -> (i32, i32) {
    %c0_i32 = arith.constant 0 : i32
    %c0_i32_0 = arith.constant 0 : i32
    %c0_i32_1 = arith.constant 0 : i32
    return %c0_i32, %c0_i32_0 : i32, i32
  }
  func.func @transform_6(%arg0: i32, %arg1: i32) -> (i32, i32) {
    %c0_i32 = arith.constant 0 : i32
    %c0_i32_0 = arith.constant 0 : i32
    %c0_i32_1 = arith.constant 0 : i32
    return %c0_i32, %c0_i32_0 : i32, i32
  }
  func.func @transform_7(%arg0: i32, %arg1: i32) -> (i32, i32, i32) {
    %c0_i32 = arith.constant 0 : i32
    %c0_i32_0 = arith.constant 0 : i32
    return %arg1, %arg0, %c0_i32 : i32, i32, i32
  }
  func.func @transform_8(%arg0: i32, %arg1: i32) -> (i32, i32) {
    %c0_i32 = arith.constant 0 : i32
    %c0_i32_0 = arith.constant 0 : i32
    return %arg0, %c0_i32 : i32, i32
  }
}

</mosaic_0001>

<llo_original>
// kernel: rnn_forward.2
$region0: #{rnn_forward.2}
  #allocation0 [shape = 'u32[]', space=smem, size = 0x4, offset = 0x4, fixed_abs, tag = 'smem constant byte address 0x4 - core index']
  #allocation1 [shape = 'u32[144,128]{1,0:T(1,128)}', space=vmem, size = 0x12000, scoped, tag = 'internal scratch']
  #allocation2 [shape = 'f32[8,128]{1,0:T(8,128)}', space=vmem, size = 0x1000, scoped, tag = 'scratch operand']
  #allocation3 [shape = 'f32[64,128]{1,0:T(8,128)}', space=vmem, size = 0x8000, scoped, tag = 'scratch operand']
  %s0 = inlined_call_operand.vmem [shape: bf16[8,8,128], index: 0, kind: input, shape index: {}]
  %s1 = inlined_call_operand.vmem [shape: f32[8,128], index: 1, kind: input, shape index: {}]
  %s2 = inlined_call_operand.vmem [shape: bf16[128,128], index: 2, kind: input, shape index: {}]
  %s3 = inlined_call_operand.vmem [shape: bf16[128,128], index: 3, kind: input, shape index: {}]
  %s4 = inlined_call_operand.vmem [shape: f32[1,128], index: 4, kind: input, shape index: {}]
  %s5 = inlined_call_operand.vmem [shape: bf16[8,8,128], index: 5, kind: output, shape index: {0}]
  %s6 = inlined_call_operand.vmem [shape: f32[8,128], index: 6, kind: output, shape index: {1}]
  %7 = xla_tuple %s5, %s6
  %s8 = sld [smem:[#allocation0]]
  $region46: #{rnn_forward.2} parent=0
    _
  %s10 = ssub.s32 1, %s8
  %s11 = scalar_select 0, %s10, %s8
  // Predicated region
  $region2: #{rnn_forward.2} parent=0 // pred_check
    _
  $region3: #{rnn_forward.2} parent=0 // pred_check_branch
    %13 = sbr.rel (0) target = $region5
  $region4: #{rnn_forward.2} parent=0 // pred_region
    _
  $region5: #{rnn_forward.2} parent=0 // pred_fallthru
    _
  // Predicated region
  $region6: #{rnn_forward.2} parent=0 // pred_check
    _
  $region7: #{rnn_forward.2} parent=0 // pred_check_branch
    %15 = sbr.rel (0) target = $region9
  $region8: #{rnn_forward.2} parent=0 // pred_region
    _
  $region9: #{rnn_forward.2} parent=0 // pred_fallthru
    _
  // Predicated region
  $region10: #{rnn_forward.2} parent=0 // pred_check
    _
  $region11: #{rnn_forward.2} parent=0 // pred_check_branch
    %17 = sbr.rel (0) target = $region13
  $region12: #{rnn_forward.2} parent=0 // pred_region
    _
  $region13: #{rnn_forward.2} parent=0 // pred_fallthru
    _
  // Predicated region
  $region14: #{rnn_forward.2} parent=0 // pred_check
    _
  $region15: #{rnn_forward.2} parent=0 // pred_check_branch
    %19 = sbr.rel (0) target = $region17
  $region16: #{rnn_forward.2} parent=0 // pred_region
    _
  $region17: #{rnn_forward.2} parent=0 // pred_fallthru
    _
  // Predicated region
  $region18: #{rnn_forward.2} parent=0 // pred_check
    _
  $region19: #{rnn_forward.2} parent=0 // pred_check_branch
    %21 = sbr.rel (0) target = $region21
  $region20: #{rnn_forward.2} parent=0 // pred_region
    _
  $region21: #{rnn_forward.2} parent=0 // pred_fallthru
    _
  %p23 = scmp.eq.s32.totalorder 0, 0
  // Predicated region
  $region22: #{rnn_forward.2} parent=0 // pred_check
    %p24 = pneg %p23
  $region23: #{rnn_forward.2} parent=0 // pred_check_branch
    %26 = sbr.rel (%p24) target = $region25
  $region24: #{rnn_forward.2} parent=0 // pred_region
    %v27 = vld [vmem:[%s1] sm:$0xff]
    %28 = vst [vmem:[#allocation2] sm:$0xff] %v27
  $region25: #{rnn_forward.2} parent=0 // pred_fallthru
    _
  %v29 = vld [vmem:[%s0] sm:$0xf]
  %v30 = vld [vmem:[%s0 + $0x4] sm:$0xf]
  %v31 = vld [vmem:[%s0 + $0x8] sm:$0xf]
  %v32 = vld [vmem:[%s0 + $0xc] sm:$0xf]
  %v33 = vld [vmem:[%s0 + $0x10] sm:$0xf]
  %v34 = vld [vmem:[%s0 + $0x14] sm:$0xf]
  %v35 = vld [vmem:[%s0 + $0x18] sm:$0xf]
  %v36 = vld [vmem:[%s0 + $0x1c] sm:$0xf]
  %v37 = vld [vmem:[%s2] sm:$0xf]
  %v38 = vld [vmem:[%s2 + $0x4] sm:$0xf]
  %v39 = vld [vmem:[%s2 + $0x8] sm:$0xf]
  %v40 = vld [vmem:[%s2 + $0xc] sm:$0xf]
  %v41 = vld [vmem:[%s2 + $0x10] sm:$0xf]
  %v42 = vld [vmem:[%s2 + $0x14] sm:$0xf]
  %v43 = vld [vmem:[%s2 + $0x18] sm:$0xf]
  %v44 = vld [vmem:[%s2 + $0x1c] sm:$0xf]
  %v45 = vld [vmem:[%s2 + $0x20] sm:$0xf]
  %v46 = vld [vmem:[%s2 + $0x24] sm:$0xf]
  %v47 = vld [vmem:[%s2 + $0x28] sm:$0xf]
  %v48 = vld [vmem:[%s2 + $0x2c] sm:$0xf]
  %v49 = vld [vmem:[%s2 + $0x30] sm:$0xf]
  %v50 = vld [vmem:[%s2 + $0x34] sm:$0xf]
  %v51 = vld [vmem:[%s2 + $0x38] sm:$0xf]
  %v52 = vld [vmem:[%s2 + $0x3c] sm:$0xf]
  %v53 = vld [vmem:[%s4] sm:$0x1]
  %v55 = vlaneseq
  %v56 = vshrl.u32 %v55, 7
  %v57 = vsub.s32 0, %v56
  %v58 = vrot.slane %v53, %v57
  %v68 = vunpack.c.l.b16 %v29
  %v69 = vunpack.c.l.b16 %v30
  %v70 = vunpack.c.l.b16 %v31
  %v71 = vunpack.c.l.b16 %v32
  %v72 = vunpack.c.l.b16 %v33
  %v73 = vunpack.c.l.b16 %v34
  %v74 = vunpack.c.l.b16 %v35
  %v75 = vunpack.c.l.b16 %v36
  %v76 = vpack.c.b16 %v69, %v68
  %v77 = vpack.c.b16 %v71, %v70
  %v78 = vpack.c.b16 %v73, %v72
  %v79 = vpack.c.b16 %v75, %v74
  %v100 = vunpack.c.l.b16 %v37
  %v101 = vunpack.c.l.b16 %v38
  %v102 = vunpack.c.l.b16 %v39
  %v103 = vunpack.c.l.b16 %v40
  %v104 = vunpack.c.l.b16 %v41
  %v105 = vunpack.c.l.b16 %v42
  %v106 = vunpack.c.l.b16 %v43
  %v107 = vunpack.c.l.b16 %v44
  %v108 = vunpack.c.l.b16 %v45
  %v109 = vunpack.c.l.b16 %v46
  %v110 = vunpack.c.l.b16 %v47
  %v111 = vunpack.c.l.b16 %v48
  %v112 = vunpack.c.l.b16 %v49
  %v113 = vunpack.c.l.b16 %v50
  %v114 = vunpack.c.l.b16 %v51
  %v115 = vunpack.c.l.b16 %v52
  %v116 = vpack.c.b16 %v101, %v100
  %v117 = vpack.c.b16 %v103, %v102
  %v118 = vpack.c.b16 %v105, %v104
  %v119 = vpack.c.b16 %v107, %v106
  %v120 = vpack.c.b16 %v109, %v108
  %v121 = vpack.c.b16 %v111, %v110
  %v122 = vpack.c.b16 %v113, %v112
  %v123 = vpack.c.b16 %v115, %v114
  %132 = vmatprep.subr.bf16.mxu0 0
  %133 = vmatpush1.bf16.msra.mxu0 %v116
  %134 = vmatprep.subr.bf16.mxu0 0
  %135 = vmatpush1.bf16.msra.mxu0 %v117
  %136 = vmatprep.subr.bf16.mxu0 0
  %137 = vmatpush1.bf16.msra.mxu0 %v118
  %138 = vmatprep.subr.bf16.mxu0 0
  %139 = vmatpush1.bf16.msra.mxu0 %v119
  %140 = vmatprep.subr.bf16.mxu0 0
  %141 = vmatpush1.bf16.msra.mxu0 %v120
  %142 = vmatprep.subr.bf16.mxu0 0
  %143 = vmatpush1.bf16.msra.mxu0 %v121
  %144 = vmatprep.subr.bf16.mxu0 0
  %145 = vmatpush1.bf16.msra.mxu0 %v122
  %146 = vmatprep.subr.bf16.mxu0 0
  %147 = vmatpush1.bf16.msra.mxu0 %v123
  %148 = vmatprep.subr.bf16.mxu0 0
  %149 = vmatpush1.bf16.msra.mxu0 0
  %150 = vmatprep.subr.bf16.mxu0 0
  %151 = vmatpush1.bf16.msra.mxu0 0
  %152 = vmatprep.subr.bf16.mxu0 0
  %153 = vmatpush1.bf16.msra.mxu0 0
  %154 = vmatprep.subr.bf16.mxu0 0
  %155 = vmatpush1.bf16.msra.mxu0 0
  %156 = vmatprep.subr.bf16.mxu0 0
  %157 = vmatpush1.bf16.msra.mxu0 0
  %158 = vmatprep.subr.bf16.mxu0 0
  %159 = vmatpush1.bf16.msra.mxu0 0
  %160 = vmatprep.subr.bf16.mxu0 0
  %161 = vmatpush1.bf16.msra.mxu0 0
  %162 = vmatprep.subr.bf16.mxu0 0
  %163 = vmatpush1.bf16.msra.mxu0 0
  %164 = vmatprep.mubr.bf16.mxu0 0
  %165 = vmatmul.mubr.bf16.gmra.mrb[0].mxu0 %v76
  %v166 = vpop.f32.mrb[0].mxu0
  %v167 = vadd.f32 %v58, %v166
  %v168 = vpop.f32.mrb[0].mxu0
  %v169 = vpop.f32.mrb[0].mxu0
  %v170 = vadd.f32 %v58, %v169
  %v171 = vpop.f32.mrb[0].mxu0
  %172 = vmatprep.mubr.bf16.mxu0 0
  %173 = vmatmul.mubr.bf16.gmra.mrb[0].mxu0 %v77
  %v174 = vpop.f32.mrb[0].mxu0
  %v175 = vadd.f32 %v58, %v174
  %v176 = vpop.f32.mrb[0].mxu0
  %v177 = vpop.f32.mrb[0].mxu0
  %v178 = vadd.f32 %v58, %v177
  %v179 = vpop.f32.mrb[0].mxu0
  %180 = vmatprep.mubr.bf16.mxu0 0
  %181 = vmatmul.mubr.bf16.gmra.mrb[0].mxu0 %v78
  %v182 = vpop.f32.mrb[0].mxu0
  %v183 = vadd.f32 %v58, %v182
  %v184 = vpop.f32.mrb[0].mxu0
  %v185 = vpop.f32.mrb[0].mxu0
  %v186 = vadd.f32 %v58, %v185
  %v187 = vpop.f32.mrb[0].mxu0
  %188 = vmatprep.mubr.bf16.mxu0 0
  %189 = vmatmul.mubr.bf16.gmra.mrb[0].mxu0 %v79
  %v190 = vpop.f32.mrb[0].mxu0
  %v191 = vadd.f32 %v58, %v190
  %v192 = vpop.f32.mrb[0].mxu0
  %v193 = vpop.f32.mrb[0].mxu0
  %v194 = vadd.f32 %v58, %v193
  %v195 = vpop.f32.mrb[0].mxu0
  %196 = vdwg.mxu0
  %197 = vst [vmem:[#allocation3] sm:$0xff] %v167
  %198 = vst [vmem:[#allocation3 + $0x8] sm:$0xff] %v170
  %199 = vst [vmem:[#allocation3 + $0x10] sm:$0xff] %v175
  %200 = vst [vmem:[#allocation3 + $0x18] sm:$0xff] %v178
  %201 = vst [vmem:[#allocation3 + $0x20] sm:$0xff] %v183
  %202 = vst [vmem:[#allocation3 + $0x28] sm:$0xff] %v186
  %203 = vst [vmem:[#allocation3 + $0x30] sm:$0xff] %v191
  %204 = vst [vmem:[#allocation3 + $0x38] sm:$0xff] %v194
  %v205 = vld [vmem:[%s3] sm:$0xf]
  %v206 = vld [vmem:[%s3 + $0x4] sm:$0xf]
  %v207 = vld [vmem:[%s3 + $0x8] sm:$0xf]
  %v208 = vld [vmem:[%s3 + $0xc] sm:$0xf]
  %v209 = vld [vmem:[%s3 + $0x10] sm:$0xf]
  %v210 = vld [vmem:[%s3 + $0x14] sm:$0xf]
  %v211 = vld [vmem:[%s3 + $0x18] sm:$0xf]
  %v212 = vld [vmem:[%s3 + $0x1c] sm:$0xf]
  %v213 = vld [vmem:[%s3 + $0x20] sm:$0xf]
  %v214 = vld [vmem:[%s3 + $0x24] sm:$0xf]
  %v215 = vld [vmem:[%s3 + $0x28] sm:$0xf]
  %v216 = vld [vmem:[%s3 + $0x2c] sm:$0xf]
  %v217 = vld [vmem:[%s3 + $0x30] sm:$0xf]
  %v218 = vld [vmem:[%s3 + $0x34] sm:$0xf]
  %v219 = vld [vmem:[%s3 + $0x38] sm:$0xf]
  %v220 = vld [vmem:[%s3 + $0x3c] sm:$0xf]
  %v221 = vld [vmem:[#allocation2] sm:$0xff]
  %v222 = vld [vmem:[#allocation3] sm:$0xff]
  %v223 = vpack.c.bf16 %v221, %v221
  %v240 = vunpack.c.l.b16 %v205
  %v241 = vunpack.c.l.b16 %v206
  %v242 = vunpack.c.l.b16 %v207
  %v243 = vunpack.c.l.b16 %v208
  %v244 = vunpack.c.l.b16 %v209
  %v245 = vunpack.c.l.b16 %v210
  %v246 = vunpack.c.l.b16 %v211
  %v247 = vunpack.c.l.b16 %v212
  %v248 = vunpack.c.l.b16 %v213
  %v249 = vunpack.c.l.b16 %v214
  %v250 = vunpack.c.l.b16 %v215
  %v251 = vunpack.c.l.b16 %v216
  %v252 = vunpack.c.l.b16 %v217
  %v253 = vunpack.c.l.b16 %v218
  %v254 = vunpack.c.l.b16 %v219
  %v255 = vunpack.c.l.b16 %v220
  %v256 = vpack.c.b16 %v241, %v240
  %v257 = vpack.c.b16 %v243, %v242
  %v258 = vpack.c.b16 %v245, %v244
  %v259 = vpack.c.b16 %v247, %v246
  %v260 = vpack.c.b16 %v249, %v248
  %v261 = vpack.c.b16 %v251, %v250
  %v262 = vpack.c.b16 %v253, %v252
  %v263 = vpack.c.b16 %v255, %v254
  %272 = vmatprep.subr.bf16.mxu0 0
  %273 = vmatpush1.bf16.msra.mxu0 %v256
  %274 = vmatprep.subr.bf16.mxu0 0
  %275 = vmatpush1.bf16.msra.mxu0 %v257
  %276 = vmatprep.subr.bf16.mxu0 0
  %277 = vmatpush1.bf16.msra.mxu0 %v258
  %278 = vmatprep.subr.bf16.mxu0 0
  %279 = vmatpush1.bf16.msra.mxu0 %v259
  %280 = vmatprep.subr.bf16.mxu0 0
  %281 = vmatpush1.bf16.msra.mxu0 %v260
  %282 = vmatprep.subr.bf16.mxu0 0
  %283 = vmatpush1.bf16.msra.mxu0 %v261
  %284 = vmatprep.subr.bf16.mxu0 0
  %285 = vmatpush1.bf16.msra.mxu0 %v262
  %286 = vmatprep.subr.bf16.mxu0 0
  %287 = vmatpush1.bf16.msra.mxu0 %v263
  %288 = vmatprep.subr.bf16.mxu0 0
  %289 = vmatpush1.bf16.msra.mxu0 0
  %290 = vmatprep.subr.bf16.mxu0 0
  %291 = vmatpush1.bf16.msra.mxu0 0
  %292 = vmatprep.subr.bf16.mxu0 0
  %293 = vmatpush1.bf16.msra.mxu0 0
  %294 = vmatprep.subr.bf16.mxu0 0
  %295 = vmatpush1.bf16.msra.mxu0 0
  %296 = vmatprep.subr.bf16.mxu0 0
  %297 = vmatpush1.bf16.msra.mxu0 0
  %298 = vmatprep.subr.bf16.mxu0 0
  %299 = vmatpush1.bf16.msra.mxu0 0
  %300 = vmatprep.subr.bf16.mxu0 0
  %301 = vmatpush1.bf16.msra.mxu0 0
  %302 = vmatprep.subr.bf16.mxu0 0
  %303 = vmatpush1.bf16.msra.mxu0 0
  %304 = vmatprep.mubr.bf16.mxu0 0
  %305 = vmatmul.mubr.bf16.gmra.mrb[0].mxu0 %v223
  %v306 = vpop.f32.mrb[0].mxu0
  %v307 = vadd.f32 0.0, %v306
  %v308 = vpop.f32.mrb[0].mxu0
  %v309 = vpop.f32.mrb[0].mxu0
  %v310 = vpop.f32.mrb[0].mxu0
  %311 = vdwg.mxu0
  %v312 = vadd.f32 %v222, %v307
  %v313 = vmax.f32 %v312, 0.0
  %v314 = vpack.c.bf16 %v313, %v313
  %315 = vst [vmem:[%s5] sm:$0xf] %v314
  %v316 = vld [vmem:[#allocation3 + $0x8] sm:$0xff]
  %317 = vmatprep.subr.bf16.mxu0 0
  %318 = vmatpush1.bf16.msra.mxu0 %v256
  %319 = vmatprep.subr.bf16.mxu0 0
  %320 = vmatpush1.bf16.msra.mxu0 %v257
  %321 = vmatprep.subr.bf16.mxu0 0
  %322 = vmatpush1.bf16.msra.mxu0 %v258
  %323 = vmatprep.subr.bf16.mxu0 0
  %324 = vmatpush1.bf16.msra.mxu0 %v259
  %325 = vmatprep.subr.bf16.mxu0 0
  %326 = vmatpush1.bf16.msra.mxu0 %v260
  %327 = vmatprep.subr.bf16.mxu0 0
  %328 = vmatpush1.bf16.msra.mxu0 %v261
  %329 = vmatprep.subr.bf16.mxu0 0
  %330 = vmatpush1.bf16.msra.mxu0 %v262
  %331 = vmatprep.subr.bf16.mxu0 0
  %332 = vmatpush1.bf16.msra.mxu0 %v263
  %333 = vmatprep.subr.bf16.mxu0 0
  %334 = vmatpush1.bf16.msra.mxu0 0
  %335 = vmatprep.subr.bf16.mxu0 0
  %336 = vmatpush1.bf16.msra.mxu0 0
  %337 = vmatprep.subr.bf16.mxu0 0
  %338 = vmatpush1.bf16.msra.mxu0 0
  %339 = vmatprep.subr.bf16.mxu0 0
  %340 = vmatpush1.bf16.msra.mxu0 0
  %341 = vmatprep.subr.bf16.mxu0 0
  %342 = vmatpush1.bf16.msra.mxu0 0
  %343 = vmatprep.subr.bf16.mxu0 0
  %344 = vmatpush1.bf16.msra.mxu0 0
  %345 = vmatprep.subr.bf16.mxu0 0
  %346 = vmatpush1.bf16.msra.mxu0 0
  %347 = vmatprep.subr.bf16.mxu0 0
  %348 = vmatpush1.bf16.msra.mxu0 0
  %349 = vmatprep.mubr.bf16.mxu0 0
  %350 = vmatmul.mubr.bf16.gmra.mrb[0].mxu0 %v314
  %v351 = vpop.f32.mrb[0].mxu0
  %v352 = vadd.f32 0.0, %v351
  %v353 = vpop.f32.mrb[0].mxu0
  %v354 = vpop.f32.mrb[0].mxu0
  %v355 = vpop.f32.mrb[0].mxu0
  %356 = vdwg.mxu0
  %v357 = vadd.f32 %v316, %v352
  %v358 = vmax.f32 %v357, 0.0
  %v359 = vpack.c.bf16 %v358, %v358
  %s360 = scalar_lea.vmem %s5, 4
  %361 = vst [vmem:[%s360] sm:$0xf] %v359
  %v362 = vld [vmem:[#allocation3 + $0x10] sm:$0xff]
  %363 = vmatprep.subr.bf16.mxu0 0
  %364 = vmatpush1.bf16.msra.mxu0 %v256
  %365 = vmatprep.subr.bf16.mxu0 0
  %366 = vmatpush1.bf16.msra.mxu0 %v257
  %367 = vmatprep.subr.bf16.mxu0 0
  %368 = vmatpush1.bf16.msra.mxu0 %v258
  %369 = vmatprep.subr.bf16.mxu0 0
  %370 = vmatpush1.bf16.msra.mxu0 %v259
  %371 = vmatprep.subr.bf16.mxu0 0
  %372 = vmatpush1.bf16.msra.mxu0 %v260
  %373 = vmatprep.subr.bf16.mxu0 0
  %374 = vmatpush1.bf16.msra.mxu0 %v261
  %375 = vmatprep.subr.bf16.mxu0 0
  %376 = vmatpush1.bf16.msra.mxu0 %v262
  %377 = vmatprep.subr.bf16.mxu0 0
  %378 = vmatpush1.bf16.msra.mxu0 %v263
  %379 = vmatprep.subr.bf16.mxu0 0
  %380 = vmatpush1.bf16.msra.mxu0 0
  %381 = vmatprep.subr.bf16.mxu0 0
  %382 = vmatpush1.bf16.msra.mxu0 0
  %383 = vmatprep.subr.bf16.mxu0 0
  %384 = vmatpush1.bf16.msra.mxu0 0
  %385 = vmatprep.subr.bf16.mxu0 0
  %386 = vmatpush1.bf16.msra.mxu0 0
  %387 = vmatprep.subr.bf16.mxu0 0
  %388 = vmatpush1.bf16.msra.mxu0 0
  %389 = vmatprep.subr.bf16.mxu0 0
  %390 = vmatpush1.bf16.msra.mxu0 0
  %391 = vmatprep.subr.bf16.mxu0 0
  %392 = vmatpush1.bf16.msra.mxu0 0
  %393 = vmatprep.subr.bf16.mxu0 0
  %394 = vmatpush1.bf16.msra.mxu0 0
  %395 = vmatprep.mubr.bf16.mxu0 0
  %396 = vmatmul.mubr.bf16.gmra.mrb[0].mxu0 %v359
  %v397 = vpop.f32.mrb[0].mxu0
  %v398 = vadd.f32 0.0, %v397
  %v399 = vpop.f32.mrb[0].mxu0
  %v400 = vpop.f32.mrb[0].mxu0
  %v401 = vpop.f32.mrb[0].mxu0
  %402 = vdwg.mxu0
  %v403 = vadd.f32 %v362, %v398
  %v404 = vmax.f32 %v403, 0.0
  %v405 = vpack.c.bf16 %v404, %v404
  %s406 = scalar_lea.vmem %s5, 8
  %407 = vst [vmem:[%s406] sm:$0xf] %v405
  %v408 = vld [vmem:[#allocation3 + $0x18] sm:$0xff]
  %409 = vmatprep.subr.bf16.mxu0 0
  %410 = vmatpush1.bf16.msra.mxu0 %v256
  %411 = vmatprep.subr.bf16.mxu0 0
  %412 = vmatpush1.bf16.msra.mxu0 %v257
  %413 = vmatprep.subr.bf16.mxu0 0
  %414 = vmatpush1.bf16.msra.mxu0 %v258
  %415 = vmatprep.subr.bf16.mxu0 0
  %416 = vmatpush1.bf16.msra.mxu0 %v259
  %417 = vmatprep.subr.bf16.mxu0 0
  %418 = vmatpush1.bf16.msra.mxu0 %v260
  %419 = vmatprep.subr.bf16.mxu0 0
  %420 = vmatpush1.bf16.msra.mxu0 %v261
  %421 = vmatprep.subr.bf16.mxu0 0
  %422 = vmatpush1.bf16.msra.mxu0 %v262
  %423 = vmatprep.subr.bf16.mxu0 0
  %424 = vmatpush1.bf16.msra.mxu0 %v263
  %425 = vmatprep.subr.bf16.mxu0 0
  %426 = vmatpush1.bf16.msra.mxu0 0
  %427 = vmatprep.subr.bf16.mxu0 0
  %428 = vmatpush1.bf16.msra.mxu0 0
  %429 = vmatprep.subr.bf16.mxu0 0
  %430 = vmatpush1.bf16.msra.mxu0 0
  %431 = vmatprep.subr.bf16.mxu0 0
  %432 = vmatpush1.bf16.msra.mxu0 0
  %433 = vmatprep.subr.bf16.mxu0 0
  %434 = vmatpush1.bf16.msra.mxu0 0
  %435 = vmatprep.subr.bf16.mxu0 0
  %436 = vmatpush1.bf16.msra.mxu0 0
  %437 = vmatprep.subr.bf16.mxu0 0
  %438 = vmatpush1.bf16.msra.mxu0 0
  %439 = vmatprep.subr.bf16.mxu0 0
  %440 = vmatpush1.bf16.msra.mxu0 0
  %441 = vmatprep.mubr.bf16.mxu0 0
  %442 = vmatmul.mubr.bf16.gmra.mrb[0].mxu0 %v405
  %v443 = vpop.f32.mrb[0].mxu0
  %v444 = vadd.f32 0.0, %v443
  %v445 = vpop.f32.mrb[0].mxu0
  %v446 = vpop.f32.mrb[0].mxu0
  %v447 = vpop.f32.mrb[0].mxu0
  %448 = vdwg.mxu0
  %v449 = vadd.f32 %v408, %v444
  %v450 = vmax.f32 %v449, 0.0
  %v451 = vpack.c.bf16 %v450, %v450
  %s452 = scalar_lea.vmem %s5, 12
  %453 = vst [vmem:[%s452] sm:$0xf] %v451
  %v454 = vld [vmem:[#allocation3 + $0x20] sm:$0xff]
  %455 = vmatprep.subr.bf16.mxu0 0
  %456 = vmatpush1.bf16.msra.mxu0 %v256
  %457 = vmatprep.subr.bf16.mxu0 0
  %458 = vmatpush1.bf16.msra.mxu0 %v257
  %459 = vmatprep.subr.bf16.mxu0 0
  %460 = vmatpush1.bf16.msra.mxu0 %v258
  %461 = vmatprep.subr.bf16.mxu0 0
  %462 = vmatpush1.bf16.msra.mxu0 %v259
  %463 = vmatprep.subr.bf16.mxu0 0
  %464 = vmatpush1.bf16.msra.mxu0 %v260
  %465 = vmatprep.subr.bf16.mxu0 0
  %466 = vmatpush1.bf16.msra.mxu0 %v261
  %467 = vmatprep.subr.bf16.mxu0 0
  %468 = vmatpush1.bf16.msra.mxu0 %v262
  %469 = vmatprep.subr.bf16.mxu0 0
  %470 = vmatpush1.bf16.msra.mxu0 %v263
  %471 = vmatprep.subr.bf16.mxu0 0
  %472 = vmatpush1.bf16.msra.mxu0 0
  %473 = vmatprep.subr.bf16.mxu0 0
  %474 = vmatpush1.bf16.msra.mxu0 0
  %475 = vmatprep.subr.bf16.mxu0 0
  %476 = vmatpush1.bf16.msra.mxu0 0
  %477 = vmatprep.subr.bf16.mxu0 0
  %478 = vmatpush1.bf16.msra.mxu0 0
  %479 = vmatprep.subr.bf16.mxu0 0
  %480 = vmatpush1.bf16.msra.mxu0 0
  %481 = vmatprep.subr.bf16.mxu0 0
  %482 = vmatpush1.bf16.msra.mxu0 0
  %483 = vmatprep.subr.bf16.mxu0 0
  %484 = vmatpush1.bf16.msra.mxu0 0
  %485 = vmatprep.subr.bf16.mxu0 0
  %486 = vmatpush1.bf16.msra.mxu0 0
  %487 = vmatprep.mubr.bf16.mxu0 0
  %488 = vmatmul.mubr.bf16.gmra.mrb[0].mxu0 %v451
  %v489 = vpop.f32.mrb[0].mxu0
  %v490 = vadd.f32 0.0, %v489
  %v491 = vpop.f32.mrb[0].mxu0
  %v492 = vpop.f32.mrb[0].mxu0
  %v493 = vpop.f32.mrb[0].mxu0
  %494 = vdwg.mxu0
  %v495 = vadd.f32 %v454, %v490
  %v496 = vmax.f32 %v495, 0.0
  %v497 = vpack.c.bf16 %v496, %v496
  %s498 = scalar_lea.vmem %s5, 16
  %499 = vst [vmem:[%s498] sm:$0xf] %v497
  %v500 = vld [vmem:[#allocation3 + $0x28] sm:$0xff]
  %501 = vmatprep.subr.bf16.mxu0 0
  %502 = vmatpush1.bf16.msra.mxu0 %v256
  %503 = vmatprep.subr.bf16.mxu0 0
  %504 = vmatpush1.bf16.msra.mxu0 %v257
  %505 = vmatprep.subr.bf16.mxu0 0
  %506 = vmatpush1.bf16.msra.mxu0 %v258
  %507 = vmatprep.subr.bf16.mxu0 0
  %508 = vmatpush1.bf16.msra.mxu0 %v259
  %509 = vmatprep.subr.bf16.mxu0 0
  %510 = vmatpush1.bf16.msra.mxu0 %v260
  %511 = vmatprep.subr.bf16.mxu0 0
  %512 = vmatpush1.bf16.msra.mxu0 %v261
  %513 = vmatprep.subr.bf16.mxu0 0
  %514 = vmatpush1.bf16.msra.mxu0 %v262
  %515 = vmatprep.subr.bf16.mxu0 0
  %516 = vmatpush1.bf16.msra.mxu0 %v263
  %517 = vmatprep.subr.bf16.mxu0 0
  %518 = vmatpush1.bf16.msra.mxu0 0
  %519 = vmatprep.subr.bf16.mxu0 0
  %520 = vmatpush1.bf16.msra.mxu0 0
  %521 = vmatprep.subr.bf16.mxu0 0
  %522 = vmatpush1.bf16.msra.mxu0 0
  %523 = vmatprep.subr.bf16.mxu0 0
  %524 = vmatpush1.bf16.msra.mxu0 0
  %525 = vmatprep.subr.bf16.mxu0 0
  %526 = vmatpush1.bf16.msra.mxu0 0
  %527 = vmatprep.subr.bf16.mxu0 0
  %528 = vmatpush1.bf16.msra.mxu0 0
  %529 = vmatprep.subr.bf16.mxu0 0
  %530 = vmatpush1.bf16.msra.mxu0 0
  %531 = vmatprep.subr.bf16.mxu0 0
  %532 = vmatpush1.bf16.msra.mxu0 0
  %533 = vmatprep.mubr.bf16.mxu0 0
  %534 = vmatmul.mubr.bf16.gmra.mrb[0].mxu0 %v497
  %v535 = vpop.f32.mrb[0].mxu0
  %v536 = vadd.f32 0.0, %v535
  %v537 = vpop.f32.mrb[0].mxu0
  %v538 = vpop.f32.mrb[0].mxu0
  %v539 = vpop.f32.mrb[0].mxu0
  %540 = vdwg.mxu0
  %v541 = vadd.f32 %v500, %v536
  %v542 = vmax.f32 %v541, 0.0
  %v543 = vpack.c.bf16 %v542, %v542
  %s544 = scalar_lea.vmem %s5, 20
  %545 = vst [vmem:[%s544] sm:$0xf] %v543
  %v546 = vld [vmem:[#allocation3 + $0x30] sm:$0xff]
  %547 = vmatprep.subr.bf16.mxu0 0
  %548 = vmatpush1.bf16.msra.mxu0 %v256
  %549 = vmatprep.subr.bf16.mxu0 0
  %550 = vmatpush1.bf16.msra.mxu0 %v257
  %551 = vmatprep.subr.bf16.mxu0 0
  %552 = vmatpush1.bf16.msra.mxu0 %v258
  %553 = vmatprep.subr.bf16.mxu0 0
  %554 = vmatpush1.bf16.msra.mxu0 %v259
  %555 = vmatprep.subr.bf16.mxu0 0
  %556 = vmatpush1.bf16.msra.mxu0 %v260
  %557 = vmatprep.subr.bf16.mxu0 0
  %558 = vmatpush1.bf16.msra.mxu0 %v261
  %559 = vmatprep.subr.bf16.mxu0 0
  %560 = vmatpush1.bf16.msra.mxu0 %v262
  %561 = vmatprep.subr.bf16.mxu0 0
  %562 = vmatpush1.bf16.msra.mxu0 %v263
  %563 = vmatprep.subr.bf16.mxu0 0
  %564 = vmatpush1.bf16.msra.mxu0 0
  %565 = vmatprep.subr.bf16.mxu0 0
  %566 = vmatpush1.bf16.msra.mxu0 0
  %567 = vmatprep.subr.bf16.mxu0 0
  %568 = vmatpush1.bf16.msra.mxu0 0
  %569 = vmatprep.subr.bf16.mxu0 0
  %570 = vmatpush1.bf16.msra.mxu0 0
  %571 = vmatprep.subr.bf16.mxu0 0
  %572 = vmatpush1.bf16.msra.mxu0 0
  %573 = vmatprep.subr.bf16.mxu0 0
  %574 = vmatpush1.bf16.msra.mxu0 0
  %575 = vmatprep.subr.bf16.mxu0 0
  %576 = vmatpush1.bf16.msra.mxu0 0
  %577 = vmatprep.subr.bf16.mxu0 0
  %578 = vmatpush1.bf16.msra.mxu0 0
  %579 = vmatprep.mubr.bf16.mxu0 0
  %580 = vmatmul.mubr.bf16.gmra.mrb[0].mxu0 %v543
  %v581 = vpop.f32.mrb[0].mxu0
  %v582 = vadd.f32 0.0, %v581
  %v583 = vpop.f32.mrb[0].mxu0
  %v584 = vpop.f32.mrb[0].mxu0
  %v585 = vpop.f32.mrb[0].mxu0
  %586 = vdwg.mxu0
  %v587 = vadd.f32 %v546, %v582
  %v588 = vmax.f32 %v587, 0.0
  %v589 = vpack.c.bf16 %v588, %v588
  %s590 = scalar_lea.vmem %s5, 24
  %591 = vst [vmem:[%s590] sm:$0xf] %v589
  %v592 = vld [vmem:[#allocation3 + $0x38] sm:$0xff]
  %593 = vmatprep.subr.bf16.mxu0 0
  %594 = vmatpush1.bf16.msra.mxu0 %v256
  %595 = vmatprep.subr.bf16.mxu0 0
  %596 = vmatpush1.bf16.msra.mxu0 %v257
  %597 = vmatprep.subr.bf16.mxu0 0
  %598 = vmatpush1.bf16.msra.mxu0 %v258
  %599 = vmatprep.subr.bf16.mxu0 0
  %600 = vmatpush1.bf16.msra.mxu0 %v259
  %601 = vmatprep.subr.bf16.mxu0 0
  %602 = vmatpush1.bf16.msra.mxu0 %v260
  %603 = vmatprep.subr.bf16.mxu0 0
  %604 = vmatpush1.bf16.msra.mxu0 %v261
  %605 = vmatprep.subr.bf16.mxu0 0
  %606 = vmatpush1.bf16.msra.mxu0 %v262
  %607 = vmatprep.subr.bf16.mxu0 0
  %608 = vmatpush1.bf16.msra.mxu0 %v263
  %609 = vmatprep.subr.bf16.mxu0 0
  %610 = vmatpush1.bf16.msra.mxu0 0
  %611 = vmatprep.subr.bf16.mxu0 0
  %612 = vmatpush1.bf16.msra.mxu0 0
  %613 = vmatprep.subr.bf16.mxu0 0
  %614 = vmatpush1.bf16.msra.mxu0 0
  %615 = vmatprep.subr.bf16.mxu0 0
  %616 = vmatpush1.bf16.msra.mxu0 0
  %617 = vmatprep.subr.bf16.mxu0 0
  %618 = vmatpush1.bf16.msra.mxu0 0
  %619 = vmatprep.subr.bf16.mxu0 0
  %620 = vmatpush1.bf16.msra.mxu0 0
  %621 = vmatprep.subr.bf16.mxu0 0
  %622 = vmatpush1.bf16.msra.mxu0 0
  %623 = vmatprep.subr.bf16.mxu0 0
  %624 = vmatpush1.bf16.msra.mxu0 0
  %625 = vmatprep.mubr.bf16.mxu0 0
  %626 = vmatmul.mubr.bf16.gmra.mrb[0].mxu0 %v589
  %v627 = vpop.f32.mrb[0].mxu0
  %v628 = vadd.f32 0.0, %v627
  %v629 = vpop.f32.mrb[0].mxu0
  %v630 = vpop.f32.mrb[0].mxu0
  %v631 = vpop.f32.mrb[0].mxu0
  %632 = vdwg.mxu0
  %v633 = vadd.f32 %v592, %v628
  %v634 = vmax.f32 %v633, 0.0
  %v635 = vpack.c.bf16 %v634, %v634
  %s636 = scalar_lea.vmem %s5, 28
  %637 = vst [vmem:[%s636] sm:$0xf] %v635
  %638 = vst [vmem:[#allocation2] sm:$0xff] %v634
  // Predicated region
  $region26: #{rnn_forward.2} parent=0 // pred_check
    %p639 = pneg %p23
  $region27: #{rnn_forward.2} parent=0 // pred_check_branch
    %641 = sbr.rel (%p639) target = $region29
  $region28: #{rnn_forward.2} parent=0 // pred_region
    %642 = vst [vmem:[%s6] sm:$0xff] %v634
  $region29: #{rnn_forward.2} parent=0 // pred_fallthru
    _
  // Predicated region
  $region30: #{rnn_forward.2} parent=0 // pred_check
    _
  $region31: #{rnn_forward.2} parent=0 // pred_check_branch
    %644 = sbr.rel (0) target = $region33
  $region32: #{rnn_forward.2} parent=0 // pred_region
    _
  $region33: #{rnn_forward.2} parent=0 // pred_fallthru
    _
  // Predicated region
  $region34: #{rnn_forward.2} parent=0 // pred_check
    _
  $region35: #{rnn_forward.2} parent=0 // pred_check_branch
    %646 = sbr.rel (0) target = $region37
  $region36: #{rnn_forward.2} parent=0 // pred_region
    _
  $region37: #{rnn_forward.2} parent=0 // pred_fallthru
    _
  // Predicated region
  $region38: #{rnn_forward.2} parent=0 // pred_check
    _
  $region39: #{rnn_forward.2} parent=0 // pred_check_branch
    %648 = sbr.rel (0) target = $region41
  $region40: #{rnn_forward.2} parent=0 // pred_region
    _
  $region41: #{rnn_forward.2} parent=0 // pred_fallthru
    _
  // Predicated region
  $region42: #{rnn_forward.2} parent=0 // pred_check
    _
  $region43: #{rnn_forward.2} parent=0 // pred_check_branch
    %650 = sbr.rel (0) target = $region45
  $region44: #{rnn_forward.2} parent=0 // pred_region
    _
  $region45: #{rnn_forward.2} parent=0 // pred_fallthru
    _

// kernel: rnn_forward.3
$region0: #{rnn_forward.3}
  #allocation0 [shape = 'u32[]', space=smem, size = 0x4, offset = 0x4, fixed_abs, tag = 'smem constant byte address 0x4 - core index']
  #allocation1 [shape = 'u32[144,128]{1,0:T(1,128)}', space=vmem, size = 0x12000, scoped, tag = 'internal scratch']
  #allocation2 [shape = 'f32[8,128]{1,0:T(8,128)}', space=vmem, size = 0x1000, scoped, tag = 'scratch operand']
  #allocation3 [shape = 'f32[64,128]{1,0:T(8,128)}', space=vmem, size = 0x8000, scoped, tag = 'scratch operand']
  #allocation4 [shape = 'bf16[64,128]{1,0:T(16,128)(2,1)}', space=vmem, size = 0x4000, scoped, tag = 'scratch operand']
  %s0 = inlined_call_operand.vmem [shape: bf16[8,8,128], index: 0, kind: input, shape index: {}]
  %s1 = inlined_call_operand.vmem [shape: f32[8,128], index: 1, kind: input, shape index: {}]
  %s2 = inlined_call_operand.vmem [shape: bf16[128,128], index: 2, kind: input, shape index: {}]
  %s3 = inlined_call_operand.vmem [shape: bf16[128,128], index: 3, kind: input, shape index: {}]
  %s4 = inlined_call_operand.vmem [shape: f32[1,128], index: 4, kind: input, shape index: {}]
  %s5 = inlined_call_operand.vmem [shape: bf16[128,128], index: 5, kind: input, shape index: {}]
  %s6 = inlined_call_operand.vmem [shape: f32[1,128], index: 6, kind: input, shape index: {}]
  %s7 = inlined_call_operand.vmem [shape: f32[8,8,128], index: 7, kind: output, shape index: {0}]
  %s8 = inlined_call_operand.vmem [shape: f32[8,128], index: 8, kind: output, shape index: {1}]
  %9 = xla_tuple %s7, %s8
  %s10 = sld [smem:[#allocation0]]
  $region54: #{rnn_forward.3} parent=0
    _
  %s12 = ssub.s32 1, %s10
  %s13 = scalar_select 0, %s12, %s10
  // Predicated region
  $region2: #{rnn_forward.3} parent=0 // pred_check
    _
  $region3: #{rnn_forward.3} parent=0 // pred_check_branch
    %15 = sbr.rel (0) target = $region5
  $region4: #{rnn_forward.3} parent=0 // pred_region
    _
  $region5: #{rnn_forward.3} parent=0 // pred_fallthru
    _
  // Predicated region
  $region6: #{rnn_forward.3} parent=0 // pred_check
    _
  $region7: #{rnn_forward.3} parent=0 // pred_check_branch
    %17 = sbr.rel (0) target = $region9
  $region8: #{rnn_forward.3} parent=0 // pred_region
    _
  $region9: #{rnn_forward.3} parent=0 // pred_fallthru
    _
  // Predicated region
  $region10: #{rnn_forward.3} parent=0 // pred_check
    _
  $region11: #{rnn_forward.3} parent=0 // pred_check_branch
    %19 = sbr.rel (0) target = $region13
  $region12: #{rnn_forward.3} parent=0 // pred_region
    _
  $region13: #{rnn_forward.3} parent=0 // pred_fallthru
    _
  // Predicated region
  $region14: #{rnn_forward.3} parent=0 // pred_check
    _
  $region15: #{rnn_forward.3} parent=0 // pred_check_branch
    %21 = sbr.rel (0) target = $region17
  $region16: #{rnn_forward.3} parent=0 // pred_region
    _
  $region17: #{rnn_forward.3} parent=0 // pred_fallthru
    _
  // Predicated region
  $region18: #{rnn_forward.3} parent=0 // pred_check
    _
  $region19: #{rnn_forward.3} parent=0 // pred_check_branch
    %23 = sbr.rel (0) target = $region21
  $region20: #{rnn_forward.3} parent=0 // pred_region
    _
  $region21: #{rnn_forward.3} parent=0 // pred_fallthru
    _
  // Predicated region
  $region22: #{rnn_forward.3} parent=0 // pred_check
    _
  $region23: #{rnn_forward.3} parent=0 // pred_check_branch
    %25 = sbr.rel (0) target = $region25
  $region24: #{rnn_forward.3} parent=0 // pred_region
    _
  $region25: #{rnn_forward.3} parent=0 // pred_fallthru
    _
  // Predicated region
  $region26: #{rnn_forward.3} parent=0 // pred_check
    _
  $region27: #{rnn_forward.3} parent=0 // pred_check_branch
    %27 = sbr.rel (0) target = $region29
  $region28: #{rnn_forward.3} parent=0 // pred_region
    _
  $region29: #{rnn_forward.3} parent=0 // pred_fallthru
    _
  %p29 = scmp.eq.s32.totalorder 0, 0
  // Predicated region
  $region30: #{rnn_forward.3} parent=0 // pred_check
    %p30 = pneg %p29
  $region31: #{rnn_forward.3} parent=0 // pred_check_branch
    %32 = sbr.rel (%p30) target = $region33
  $region32: #{rnn_forward.3} parent=0 // pred_region
    %v33 = vld [vmem:[%s1] sm:$0xff]
    %34 = vst [vmem:[#allocation2] sm:$0xff] %v33
  $region33: #{rnn_forward.3} parent=0 // pred_fallthru
    _
  %v35 = vld [vmem:[%s0] sm:$0xf]
  %v36 = vld [vmem:[%s0 + $0x4] sm:$0xf]
  %v37 = vld [vmem:[%s0 + $0x8] sm:$0xf]
  %v38 = vld [vmem:[%s0 + $0xc] sm:$0xf]
  %v39 = vld [vmem:[%s0 + $0x10] sm:$0xf]
  %v40 = vld [vmem:[%s0 + $0x14] sm:$0xf]
  %v41 = vld [vmem:[%s0 + $0x18] sm:$0xf]
  %v42 = vld [vmem:[%s0 + $0x1c] sm:$0xf]
  %v43 = vld [vmem:[%s2] sm:$0xf]
  %v44 = vld [vmem:[%s2 + $0x4] sm:$0xf]
  %v45 = vld [vmem:[%s2 + $0x8] sm:$0xf]
  %v46 = vld [vmem:[%s2 + $0xc] sm:$0xf]
  %v47 = vld [vmem:[%s2 + $0x10] sm:$0xf]
  %v48 = vld [vmem:[%s2 + $0x14] sm:$0xf]
  %v49 = vld [vmem:[%s2 + $0x18] sm:$0xf]
  %v50 = vld [vmem:[%s2 + $0x1c] sm:$0xf]
  %v51 = vld [vmem:[%s2 + $0x20] sm:$0xf]
  %v52 = vld [vmem:[%s2 + $0x24] sm:$0xf]
  %v53 = vld [vmem:[%s2 + $0x28] sm:$0xf]
  %v54 = vld [vmem:[%s2 + $0x2c] sm:$0xf]
  %v55 = vld [vmem:[%s2 + $0x30] sm:$0xf]
  %v56 = vld [vmem:[%s2 + $0x34] sm:$0xf]
  %v57 = vld [vmem:[%s2 + $0x38] sm:$0xf]
  %v58 = vld [vmem:[%s2 + $0x3c] sm:$0xf]
  %v59 = vld [vmem:[%s4] sm:$0x1]
  %v61 = vlaneseq
  %v62 = vshrl.u32 %v61, 7
  %v63 = vsub.s32 0, %v62
  %v64 = vrot.slane %v59, %v63
  %v74 = vunpack.c.l.b16 %v35
  %v75 = vunpack.c.l.b16 %v36
  %v76 = vunpack.c.l.b16 %v37
  %v77 = vunpack.c.l.b16 %v38
  %v78 = vunpack.c.l.b16 %v39
  %v79 = vunpack.c.l.b16 %v40
  %v80 = vunpack.c.l.b16 %v41
  %v81 = vunpack.c.l.b16 %v42
  %v82 = vpack.c.b16 %v75, %v74
  %v83 = vpack.c.b16 %v77, %v76
  %v84 = vpack.c.b16 %v79, %v78
  %v85 = vpack.c.b16 %v81, %v80
  %v106 = vunpack.c.l.b16 %v43
  %v107 = vunpack.c.l.b16 %v44
  %v108 = vunpack.c.l.b16 %v45
  %v109 = vunpack.c.l.b16 %v46
  %v110 = vunpack.c.l.b16 %v47
  %v111 = vunpack.c.l.b16 %v48
  %v112 = vunpack.c.l.b16 %v49
  %v113 = vunpack.c.l.b16 %v50
  %v114 = vunpack.c.l.b16 %v51
  %v115 = vunpack.c.l.b16 %v52
  %v116 = vunpack.c.l.b16 %v53
  %v117 = vunpack.c.l.b16 %v54
  %v118 = vunpack.c.l.b16 %v55
  %v119 = vunpack.c.l.b16 %v56
  %v120 = vunpack.c.l.b16 %v57
  %v121 = vunpack.c.l.b16 %v58
  %v122 = vpack.c.b16 %v107, %v106
  %v123 = vpack.c.b16 %v109, %v108
  %v124 = vpack.c.b16 %v111, %v110
  %v125 = vpack.c.b16 %v113, %v112
  %v126 = vpack.c.b16 %v115, %v114
  %v127 = vpack.c.b16 %v117, %v116
  %v128 = vpack.c.b16 %v119, %v118
  %v129 = vpack.c.b16 %v121, %v120
  %138 = vmatprep.subr.bf16.mxu0 0
  %139 = vmatpush1.bf16.msra.mxu0 %v122
  %140 = vmatprep.subr.bf16.mxu0 0
  %141 = vmatpush1.bf16.msra.mxu0 %v123
  %142 = vmatprep.subr.bf16.mxu0 0
  %143 = vmatpush1.bf16.msra.mxu0 %v124
  %144 = vmatprep.subr.bf16.mxu0 0
  %145 = vmatpush1.bf16.msra.mxu0 %v125
  %146 = vmatprep.subr.bf16.mxu0 0
  %147 = vmatpush1.bf16.msra.mxu0 %v126
  %148 = vmatprep.subr.bf16.mxu0 0
  %149 = vmatpush1.bf16.msra.mxu0 %v127
  %150 = vmatprep.subr.bf16.mxu0 0
  %151 = vmatpush1.bf16.msra.mxu0 %v128
  %152 = vmatprep.subr.bf16.mxu0 0
  %153 = vmatpush1.bf16.msra.mxu0 %v129
  %154 = vmatprep.subr.bf16.mxu0 0
  %155 = vmatpush1.bf16.msra.mxu0 0
  %156 = vmatprep.subr.bf16.mxu0 0
  %157 = vmatpush1.bf16.msra.mxu0 0
  %158 = vmatprep.subr.bf16.mxu0 0
  %159 = vmatpush1.bf16.msra.mxu0 0
  %160 = vmatprep.subr.bf16.mxu0 0
  %161 = vmatpush1.bf16.msra.mxu0 0
  %162 = vmatprep.subr.bf16.mxu0 0
  %163 = vmatpush1.bf16.msra.mxu0 0
  %164 = vmatprep.subr.bf16.mxu0 0
  %165 = vmatpush1.bf16.msra.mxu0 0
  %166 = vmatprep.subr.bf16.mxu0 0
  %167 = vmatpush1.bf16.msra.mxu0 0
  %168 = vmatprep.subr.bf16.mxu0 0
  %169 = vmatpush1.bf16.msra.mxu0 0
  %170 = vmatprep.mubr.bf16.mxu0 0
  %171 = vmatmul.mubr.bf16.gmra.mrb[0].mxu0 %v82
  %v172 = vpop.f32.mrb[0].mxu0
  %v173 = vadd.f32 %v64, %v172
  %v174 = vpop.f32.mrb[0].mxu0
  %v175 = vpop.f32.mrb[0].mxu0
  %v176 = vadd.f32 %v64, %v175
  %v177 = vpop.f32.mrb[0].mxu0
  %178 = vmatprep.mubr.bf16.mxu0 0
  %179 = vmatmul.mubr.bf16.gmra.mrb[0].mxu0 %v83
  %v180 = vpop.f32.mrb[0].mxu0
  %v181 = vadd.f32 %v64, %v180
  %v182 = vpop.f32.mrb[0].mxu0
  %v183 = vpop.f32.mrb[0].mxu0
  %v184 = vadd.f32 %v64, %v183
  %v185 = vpop.f32.mrb[0].mxu0
  %186 = vmatprep.mubr.bf16.mxu0 0
  %187 = vmatmul.mubr.bf16.gmra.mrb[0].mxu0 %v84
  %v188 = vpop.f32.mrb[0].mxu0
  %v189 = vadd.f32 %v64, %v188
  %v190 = vpop.f32.mrb[0].mxu0
  %v191 = vpop.f32.mrb[0].mxu0
  %v192 = vadd.f32 %v64, %v191
  %v193 = vpop.f32.mrb[0].mxu0
  %194 = vmatprep.mubr.bf16.mxu0 0
  %195 = vmatmul.mubr.bf16.gmra.mrb[0].mxu0 %v85
  %v196 = vpop.f32.mrb[0].mxu0
  %v197 = vadd.f32 %v64, %v196
  %v198 = vpop.f32.mrb[0].mxu0
  %v199 = vpop.f32.mrb[0].mxu0
  %v200 = vadd.f32 %v64, %v199
  %v201 = vpop.f32.mrb[0].mxu0
  %202 = vdwg.mxu0
  %203 = vst [vmem:[#allocation3] sm:$0xff] %v173
  %204 = vst [vmem:[#allocation3 + $0x8] sm:$0xff] %v176
  %205 = vst [vmem:[#allocation3 + $0x10] sm:$0xff] %v181
  %206 = vst [vmem:[#allocation3 + $0x18] sm:$0xff] %v184
  %207 = vst [vmem:[#allocation3 + $0x20] sm:$0xff] %v189
  %208 = vst [vmem:[#allocation3 + $0x28] sm:$0xff] %v192
  %209 = vst [vmem:[#allocation3 + $0x30] sm:$0xff] %v197
  %210 = vst [vmem:[#allocation3 + $0x38] sm:$0xff] %v200
  %v211 = vld [vmem:[%s3] sm:$0xf]
  %v212 = vld [vmem:[%s3 + $0x4] sm:$0xf]
  %v213 = vld [vmem:[%s3 + $0x8] sm:$0xf]
  %v214 = vld [vmem:[%s3 + $0xc] sm:$0xf]
  %v215 = vld [vmem:[%s3 + $0x10] sm:$0xf]
  %v216 = vld [vmem:[%s3 + $0x14] sm:$0xf]
  %v217 = vld [vmem:[%s3 + $0x18] sm:$0xf]
  %v218 = vld [vmem:[%s3 + $0x1c] sm:$0xf]
  %v219 = vld [vmem:[%s3 + $0x20] sm:$0xf]
  %v220 = vld [vmem:[%s3 + $0x24] sm:$0xf]
  %v221 = vld [vmem:[%s3 + $0x28] sm:$0xf]
  %v222 = vld [vmem:[%s3 + $0x2c] sm:$0xf]
  %v223 = vld [vmem:[%s3 + $0x30] sm:$0xf]
  %v224 = vld [vmem:[%s3 + $0x34] sm:$0xf]
  %v225 = vld [vmem:[%s3 + $0x38] sm:$0xf]
  %v226 = vld [vmem:[%s3 + $0x3c] sm:$0xf]
  %v227 = vld [vmem:[#allocation2] sm:$0xff]
  %v228 = vld [vmem:[#allocation3] sm:$0xff]
  %v229 = vpack.c.bf16 %v227, %v227
  %v246 = vunpack.c.l.b16 %v211
  %v247 = vunpack.c.l.b16 %v212
  %v248 = vunpack.c.l.b16 %v213
  %v249 = vunpack.c.l.b16 %v214
  %v250 = vunpack.c.l.b16 %v215
  %v251 = vunpack.c.l.b16 %v216
  %v252 = vunpack.c.l.b16 %v217
  %v253 = vunpack.c.l.b16 %v218
  %v254 = vunpack.c.l.b16 %v219
  %v255 = vunpack.c.l.b16 %v220
  %v256 = vunpack.c.l.b16 %v221
  %v257 = vunpack.c.l.b16 %v222
  %v258 = vunpack.c.l.b16 %v223
  %v259 = vunpack.c.l.b16 %v224
  %v260 = vunpack.c.l.b16 %v225
  %v261 = vunpack.c.l.b16 %v226
  %v262 = vpack.c.b16 %v247, %v246
  %v263 = vpack.c.b16 %v249, %v248
  %v264 = vpack.c.b16 %v251, %v250
  %v265 = vpack.c.b16 %v253, %v252
  %v266 = vpack.c.b16 %v255, %v254
  %v267 = vpack.c.b16 %v257, %v256
  %v268 = vpack.c.b16 %v259, %v258
  %v269 = vpack.c.b16 %v261, %v260
  %278 = vmatprep.subr.bf16.mxu0 0
  %279 = vmatpush1.bf16.msra.mxu0 %v262
  %280 = vmatprep.subr.bf16.mxu0 0
  %281 = vmatpush1.bf16.msra.mxu0 %v263
  %282 = vmatprep.subr.bf16.mxu0 0
  %283 = vmatpush1.bf16.msra.mxu0 %v264
  %284 = vmatprep.subr.bf16.mxu0 0
  %285 = vmatpush1.bf16.msra.mxu0 %v265
  %286 = vmatprep.subr.bf16.mxu0 0
  %287 = vmatpush1.bf16.msra.mxu0 %v266
  %288 = vmatprep.subr.bf16.mxu0 0
  %289 = vmatpush1.bf16.msra.mxu0 %v267
  %290 = vmatprep.subr.bf16.mxu0 0
  %291 = vmatpush1.bf16.msra.mxu0 %v268
  %292 = vmatprep.subr.bf16.mxu0 0
  %293 = vmatpush1.bf16.msra.mxu0 %v269
  %294 = vmatprep.subr.bf16.mxu0 0
  %295 = vmatpush1.bf16.msra.mxu0 0
  %296 = vmatprep.subr.bf16.mxu0 0
  %297 = vmatpush1.bf16.msra.mxu0 0
  %298 = vmatprep.subr.bf16.mxu0 0
  %299 = vmatpush1.bf16.msra.mxu0 0
  %300 = vmatprep.subr.bf16.mxu0 0
  %301 = vmatpush1.bf16.msra.mxu0 0
  %302 = vmatprep.subr.bf16.mxu0 0
  %303 = vmatpush1.bf16.msra.mxu0 0
  %304 = vmatprep.subr.bf16.mxu0 0
  %305 = vmatpush1.bf16.msra.mxu0 0
  %306 = vmatprep.subr.bf16.mxu0 0
  %307 = vmatpush1.bf16.msra.mxu0 0
  %308 = vmatprep.subr.bf16.mxu0 0
  %309 = vmatpush1.bf16.msra.mxu0 0
  %310 = vmatprep.mubr.bf16.mxu0 0
  %311 = vmatmul.mubr.bf16.gmra.mrb[0].mxu0 %v229
  %v312 = vpop.f32.mrb[0].mxu0
  %v313 = vadd.f32 0.0, %v312
  %v314 = vpop.f32.mrb[0].mxu0
  %v315 = vpop.f32.mrb[0].mxu0
  %v316 = vpop.f32.mrb[0].mxu0
  %317 = vdwg.mxu0
  %v318 = vadd.f32 %v228, %v313
  %v319 = vmax.f32 %v318, 0.0
  %v320 = vpack.c.bf16 %v319, %v319
  %321 = vst [vmem:[#allocation4] sm:$0xf] %v320
  %v322 = vld [vmem:[#allocation3 + $0x8] sm:$0xff]
  %323 = vmatprep.subr.bf16.mxu0 0
  %324 = vmatpush1.bf16.msra.mxu0 %v262
  %325 = vmatprep.subr.bf16.mxu0 0
  %326 = vmatpush1.bf16.msra.mxu0 %v263
  %327 = vmatprep.subr.bf16.mxu0 0
  %328 = vmatpush1.bf16.msra.mxu0 %v264
  %329 = vmatprep.subr.bf16.mxu0 0
  %330 = vmatpush1.bf16.msra.mxu0 %v265
  %331 = vmatprep.subr.bf16.mxu0 0
  %332 = vmatpush1.bf16.msra.mxu0 %v266
  %333 = vmatprep.subr.bf16.mxu0 0
  %334 = vmatpush1.bf16.msra.mxu0 %v267
  %335 = vmatprep.subr.bf16.mxu0 0
  %336 = vmatpush1.bf16.msra.mxu0 %v268
  %337 = vmatprep.subr.bf16.mxu0 0
  %338 = vmatpush1.bf16.msra.mxu0 %v269
  %339 = vmatprep.subr.bf16.mxu0 0
  %340 = vmatpush1.bf16.msra.mxu0 0
  %341 = vmatprep.subr.bf16.mxu0 0
  %342 = vmatpush1.bf16.msra.mxu0 0
  %343 = vmatprep.subr.bf16.mxu0 0
  %344 = vmatpush1.bf16.msra.mxu0 0
  %345 = vmatprep.subr.bf16.mxu0 0
  %346 = vmatpush1.bf16.msra.mxu0 0
  %347 = vmatprep.subr.bf16.mxu0 0
  %348 = vmatpush1.bf16.msra.mxu0 0
  %349 = vmatprep.subr.bf16.mxu0 0
  %350 = vmatpush1.bf16.msra.mxu0 0
  %351 = vmatprep.subr.bf16.mxu0 0
  %352 = vmatpush1.bf16.msra.mxu0 0
  %353 = vmatprep.subr.bf16.mxu0 0
  %354 = vmatpush1.bf16.msra.mxu0 0
  %355 = vmatprep.mubr.bf16.mxu0 0
  %356 = vmatmul.mubr.bf16.gmra.mrb[0].mxu0 %v320
  %v357 = vpop.f32.mrb[0].mxu0
  %v358 = vadd.f32 0.0, %v357
  %v359 = vpop.f32.mrb[0].mxu0
  %v360 = vpop.f32.mrb[0].mxu0
  %v361 = vpop.f32.mrb[0].mxu0
  %362 = vdwg.mxu0
  %v363 = vadd.f32 %v322, %v358
  %v364 = vmax.f32 %v363, 0.0
  %v365 = vpack.c.bf16 %v364, %v364
  %v367 = vrot.slane %v365, 4
  %369 = vst [vmem:[#allocation4] sm:$0xf0] %v367
  %v370 = vld [vmem:[#allocation3 + $0x10] sm:$0xff]
  %371 = vmatprep.subr.bf16.mxu0 0
  %372 = vmatpush1.bf16.msra.mxu0 %v262
  %373 = vmatprep.subr.bf16.mxu0 0
  %374 = vmatpush1.bf16.msra.mxu0 %v263
  %375 = vmatprep.subr.bf16.mxu0 0
  %376 = vmatpush1.bf16.msra.mxu0 %v264
  %377 = vmatprep.subr.bf16.mxu0 0
  %378 = vmatpush1.bf16.msra.mxu0 %v265
  %379 = vmatprep.subr.bf16.mxu0 0
  %380 = vmatpush1.bf16.msra.mxu0 %v266
  %381 = vmatprep.subr.bf16.mxu0 0
  %382 = vmatpush1.bf16.msra.mxu0 %v267
  %383 = vmatprep.subr.bf16.mxu0 0
  %384 = vmatpush1.bf16.msra.mxu0 %v268
  %385 = vmatprep.subr.bf16.mxu0 0
  %386 = vmatpush1.bf16.msra.mxu0 %v269
  %387 = vmatprep.subr.bf16.mxu0 0
  %388 = vmatpush1.bf16.msra.mxu0 0
  %389 = vmatprep.subr.bf16.mxu0 0
  %390 = vmatpush1.bf16.msra.mxu0 0
  %391 = vmatprep.subr.bf16.mxu0 0
  %392 = vmatpush1.bf16.msra.mxu0 0
  %393 = vmatprep.subr.bf16.mxu0 0
  %394 = vmatpush1.bf16.msra.mxu0 0
  %395 = vmatprep.subr.bf16.mxu0 0
  %396 = vmatpush1.bf16.msra.mxu0 0
  %397 = vmatprep.subr.bf16.mxu0 0
  %398 = vmatpush1.bf16.msra.mxu0 0
  %399 = vmatprep.subr.bf16.mxu0 0
  %400 = vmatpush1.bf16.msra.mxu0 0
  %401 = vmatprep.subr.bf16.mxu0 0
  %402 = vmatpush1.bf16.msra.mxu0 0
  %403 = vmatprep.mubr.bf16.mxu0 0
  %404 = vmatmul.mubr.bf16.gmra.mrb[0].mxu0 %v365
  %v405 = vpop.f32.mrb[0].mxu0
  %v406 = vadd.f32 0.0, %v405
  %v407 = vpop.f32.mrb[0].mxu0
  %v408 = vpop.f32.mrb[0].mxu0
  %v409 = vpop.f32.mrb[0].mxu0
  %410 = vdwg.mxu0
  %v411 = vadd.f32 %v370, %v406
  %v412 = vmax.f32 %v411, 0.0
  %v413 = vpack.c.bf16 %v412, %v412
  %414 = vst [vmem:[#allocation4 + $0x8] sm:$0xf] %v413
  %v415 = vld [vmem:[#allocation3 + $0x18] sm:$0xff]
  %416 = vmatprep.subr.bf16.mxu0 0
  %417 = vmatpush1.bf16.msra.mxu0 %v262
  %418 = vmatprep.subr.bf16.mxu0 0
  %419 = vmatpush1.bf16.msra.mxu0 %v263
  %420 = vmatprep.subr.bf16.mxu0 0
  %421 = vmatpush1.bf16.msra.mxu0 %v264
  %422 = vmatprep.subr.bf16.mxu0 0
  %423 = vmatpush1.bf16.msra.mxu0 %v265
  %424 = vmatprep.subr.bf16.mxu0 0
  %425 = vmatpush1.bf16.msra.mxu0 %v266
  %426 = vmatprep.subr.bf16.mxu0 0
  %427 = vmatpush1.bf16.msra.mxu0 %v267
  %428 = vmatprep.subr.bf16.mxu0 0
  %429 = vmatpush1.bf16.msra.mxu0 %v268
  %430 = vmatprep.subr.bf16.mxu0 0
  %431 = vmatpush1.bf16.msra.mxu0 %v269
  %432 = vmatprep.subr.bf16.mxu0 0
  %433 = vmatpush1.bf16.msra.mxu0 0
  %434 = vmatprep.subr.bf16.mxu0 0
  %435 = vmatpush1.bf16.msra.mxu0 0
  %436 = vmatprep.subr.bf16.mxu0 0
  %437 = vmatpush1.bf16.msra.mxu0 0
  %438 = vmatprep.subr.bf16.mxu0 0
  %439 = vmatpush1.bf16.msra.mxu0 0
  %440 = vmatprep.subr.bf16.mxu0 0
  %441 = vmatpush1.bf16.msra.mxu0 0
  %442 = vmatprep.subr.bf16.mxu0 0
  %443 = vmatpush1.bf16.msra.mxu0 0
  %444 = vmatprep.subr.bf16.mxu0 0
  %445 = vmatpush1.bf16.msra.mxu0 0
  %446 = vmatprep.subr.bf16.mxu0 0
  %447 = vmatpush1.bf16.msra.mxu0 0
  %448 = vmatprep.mubr.bf16.mxu0 0
  %449 = vmatmul.mubr.bf16.gmra.mrb[0].mxu0 %v413
  %v450 = vpop.f32.mrb[0].mxu0
  %v451 = vadd.f32 0.0, %v450
  %v452 = vpop.f32.mrb[0].mxu0
  %v453 = vpop.f32.mrb[0].mxu0
  %v454 = vpop.f32.mrb[0].mxu0
  %455 = vdwg.mxu0
  %v456 = vadd.f32 %v415, %v451
  %v457 = vmax.f32 %v456, 0.0
  %v458 = vpack.c.bf16 %v457, %v457
  %v460 = vrot.slane %v458, 4
  %462 = vst [vmem:[#allocation4 + $0x8] sm:$0xf0] %v460
  %v463 = vld [vmem:[#allocation3 + $0x20] sm:$0xff]
  %464 = vmatprep.subr.bf16.mxu0 0
  %465 = vmatpush1.bf16.msra.mxu0 %v262
  %466 = vmatprep.subr.bf16.mxu0 0
  %467 = vmatpush1.bf16.msra.mxu0 %v263
  %468 = vmatprep.subr.bf16.mxu0 0
  %469 = vmatpush1.bf16.msra.mxu0 %v264
  %470 = vmatprep.subr.bf16.mxu0 0
  %471 = vmatpush1.bf16.msra.mxu0 %v265
  %472 = vmatprep.subr.bf16.mxu0 0
  %473 = vmatpush1.bf16.msra.mxu0 %v266
  %474 = vmatprep.subr.bf16.mxu0 0
  %475 = vmatpush1.bf16.msra.mxu0 %v267
  %476 = vmatprep.subr.bf16.mxu0 0
  %477 = vmatpush1.bf16.msra.mxu0 %v268
  %478 = vmatprep.subr.bf16.mxu0 0
  %479 = vmatpush1.bf16.msra.mxu0 %v269
  %480 = vmatprep.subr.bf16.mxu0 0
  %481 = vmatpush1.bf16.msra.mxu0 0
  %482 = vmatprep.subr.bf16.mxu0 0
  %483 = vmatpush1.bf16.msra.mxu0 0
  %484 = vmatprep.subr.bf16.mxu0 0
  %485 = vmatpush1.bf16.msra.mxu0 0
  %486 = vmatprep.subr.bf16.mxu0 0
  %487 = vmatpush1.bf16.msra.mxu0 0
  %488 = vmatprep.subr.bf16.mxu0 0
  %489 = vmatpush1.bf16.msra.mxu0 0
  %490 = vmatprep.subr.bf16.mxu0 0
  %491 = vmatpush1.bf16.msra.mxu0 0
  %492 = vmatprep.subr.bf16.mxu0 0
  %493 = vmatpush1.bf16.msra.mxu0 0
  %494 = vmatprep.subr.bf16.mxu0 0
  %495 = vmatpush1.bf16.msra.mxu0 0
  %496 = vmatprep.mubr.bf16.mxu0 0
  %497 = vmatmul.mubr.bf16.gmra.mrb[0].mxu0 %v458
  %v498 = vpop.f32.mrb[0].mxu0
  %v499 = vadd.f32 0.0, %v498
  %v500 = vpop.f32.mrb[0].mxu0
  %v501 = vpop.f32.mrb[0].mxu0
  %v502 = vpop.f32.mrb[0].mxu0
  %503 = vdwg.mxu0
  %v504 = vadd.f32 %v463, %v499
  %v505 = vmax.f32 %v504, 0.0
  %v506 = vpack.c.bf16 %v505, %v505
  %507 = vst [vmem:[#allocation4 + $0x10] sm:$0xf] %v506
  %v508 = vld [vmem:[#allocation3 + $0x28] sm:$0xff]
  %509 = vmatprep.subr.bf16.mxu0 0
  %510 = vmatpush1.bf16.msra.mxu0 %v262
  %511 = vmatprep.subr.bf16.mxu0 0
  %512 = vmatpush1.bf16.msra.mxu0 %v263
  %513 = vmatprep.subr.bf16.mxu0 0
  %514 = vmatpush1.bf16.msra.mxu0 %v264
  %515 = vmatprep.subr.bf16.mxu0 0
  %516 = vmatpush1.bf16.msra.mxu0 %v265
  %517 = vmatprep.subr.bf16.mxu0 0
  %518 = vmatpush1.bf16.msra.mxu0 %v266
  %519 = vmatprep.subr.bf16.mxu0 0
  %520 = vmatpush1.bf16.msra.mxu0 %v267
  %521 = vmatprep.subr.bf16.mxu0 0
  %522 = vmatpush1.bf16.msra.mxu0 %v268
  %523 = vmatprep.subr.bf16.mxu0 0
  %524 = vmatpush1.bf16.msra.mxu0 %v269
  %525 = vmatprep.subr.bf16.mxu0 0
  %526 = vmatpush1.bf16.msra.mxu0 0
  %527 = vmatprep.subr.bf16.mxu0 0
  %528 = vmatpush1.bf16.msra.mxu0 0
  %529 = vmatprep.subr.bf16.mxu0 0
  %530 = vmatpush1.bf16.msra.mxu0 0
  %531 = vmatprep.subr.bf16.mxu0 0
  %532 = vmatpush1.bf16.msra.mxu0 0
  %533 = vmatprep.subr.bf16.mxu0 0
  %534 = vmatpush1.bf16.msra.mxu0 0
  %535 = vmatprep.subr.bf16.mxu0 0
  %536 = vmatpush1.bf16.msra.mxu0 0
  %537 = vmatprep.subr.bf16.mxu0 0
  %538 = vmatpush1.bf16.msra.mxu0 0
  %539 = vmatprep.subr.bf16.mxu0 0
  %540 = vmatpush1.bf16.msra.mxu0 0
  %541 = vmatprep.mubr.bf16.mxu0 0
  %542 = vmatmul.mubr.bf16.gmra.mrb[0].mxu0 %v506
  %v543 = vpop.f32.mrb[0].mxu0
  %v544 = vadd.f32 0.0, %v543
  %v545 = vpop.f32.mrb[0].mxu0
  %v546 = vpop.f32.mrb[0].mxu0
  %v547 = vpop.f32.mrb[0].mxu0
  %548 = vdwg.mxu0
  %v549 = vadd.f32 %v508, %v544
  %v550 = vmax.f32 %v549, 0.0
  %v551 = vpack.c.bf16 %v550, %v550
  %v553 = vrot.slane %v551, 4
  %555 = vst [vmem:[#allocation4 + $0x10] sm:$0xf0] %v553
  %v556 = vld [vmem:[#allocation3 + $0x30] sm:$0xff]
  %557 = vmatprep.subr.bf16.mxu0 0
  %558 = vmatpush1.bf16.msra.mxu0 %v262
  %559 = vmatprep.subr.bf16.mxu0 0
  %560 = vmatpush1.bf16.msra.mxu0 %v263
  %561 = vmatprep.subr.bf16.mxu0 0
  %562 = vmatpush1.bf16.msra.mxu0 %v264
  %563 = vmatprep.subr.bf16.mxu0 0
  %564 = vmatpush1.bf16.msra.mxu0 %v265
  %565 = vmatprep.subr.bf16.mxu0 0
  %566 = vmatpush1.bf16.msra.mxu0 %v266
  %567 = vmatprep.subr.bf16.mxu0 0
  %568 = vmatpush1.bf16.msra.mxu0 %v267
  %569 = vmatprep.subr.bf16.mxu0 0
  %570 = vmatpush1.bf16.msra.mxu0 %v268
  %571 = vmatprep.subr.bf16.mxu0 0
  %572 = vmatpush1.bf16.msra.mxu0 %v269
  %573 = vmatprep.subr.bf16.mxu0 0
  %574 = vmatpush1.bf16.msra.mxu0 0
  %575 = vmatprep.subr.bf16.mxu0 0
  %576 = vmatpush1.bf16.msra.mxu0 0
  %577 = vmatprep.subr.bf16.mxu0 0
  %578 = vmatpush1.bf16.msra.mxu0 0
  %579 = vmatprep.subr.bf16.mxu0 0
  %580 = vmatpush1.bf16.msra.mxu0 0
  %581 = vmatprep.subr.bf16.mxu0 0
  %582 = vmatpush1.bf16.msra.mxu0 0
  %583 = vmatprep.subr.bf16.mxu0 0
  %584 = vmatpush1.bf16.msra.mxu0 0
  %585 = vmatprep.subr.bf16.mxu0 0
  %586 = vmatpush1.bf16.msra.mxu0 0
  %587 = vmatprep.subr.bf16.mxu0 0
  %588 = vmatpush1.bf16.msra.mxu0 0
  %589 = vmatprep.mubr.bf16.mxu0 0
  %590 = vmatmul.mubr.bf16.gmra.mrb[0].mxu0 %v551
  %v591 = vpop.f32.mrb[0].mxu0
  %v592 = vadd.f32 0.0, %v591
  %v593 = vpop.f32.mrb[0].mxu0
  %v594 = vpop.f32.mrb[0].mxu0
  %v595 = vpop.f32.mrb[0].mxu0
  %596 = vdwg.mxu0
  %v597 = vadd.f32 %v556, %v592
  %v598 = vmax.f32 %v597, 0.0
  %v599 = vpack.c.bf16 %v598, %v598
  %600 = vst [vmem:[#allocation4 + $0x18] sm:$0xf] %v599
  %v601 = vld [vmem:[#allocation3 + $0x38] sm:$0xff]
  %602 = vmatprep.subr.bf16.mxu0 0
  %603 = vmatpush1.bf16.msra.mxu0 %v262
  %604 = vmatprep.subr.bf16.mxu0 0
  %605 = vmatpush1.bf16.msra.mxu0 %v263
  %606 = vmatprep.subr.bf16.mxu0 0
  %607 = vmatpush1.bf16.msra.mxu0 %v264
  %608 = vmatprep.subr.bf16.mxu0 0
  %609 = vmatpush1.bf16.msra.mxu0 %v265
  %610 = vmatprep.subr.bf16.mxu0 0
  %611 = vmatpush1.bf16.msra.mxu0 %v266
  %612 = vmatprep.subr.bf16.mxu0 0
  %613 = vmatpush1.bf16.msra.mxu0 %v267
  %614 = vmatprep.subr.bf16.mxu0 0
  %615 = vmatpush1.bf16.msra.mxu0 %v268
  %616 = vmatprep.subr.bf16.mxu0 0
  %617 = vmatpush1.bf16.msra.mxu0 %v269
  %618 = vmatprep.subr.bf16.mxu0 0
  %619 = vmatpush1.bf16.msra.mxu0 0
  %620 = vmatprep.subr.bf16.mxu0 0
  %621 = vmatpush1.bf16.msra.mxu0 0
  %622 = vmatprep.subr.bf16.mxu0 0
  %623 = vmatpush1.bf16.msra.mxu0 0
  %624 = vmatprep.subr.bf16.mxu0 0
  %625 = vmatpush1.bf16.msra.mxu0 0
  %626 = vmatprep.subr.bf16.mxu0 0
  %627 = vmatpush1.bf16.msra.mxu0 0
  %628 = vmatprep.subr.bf16.mxu0 0
  %629 = vmatpush1.bf16.msra.mxu0 0
  %630 = vmatprep.subr.bf16.mxu0 0
  %631 = vmatpush1.bf16.msra.mxu0 0
  %632 = vmatprep.subr.bf16.mxu0 0
  %633 = vmatpush1.bf16.msra.mxu0 0
  %634 = vmatprep.mubr.bf16.mxu0 0
  %635 = vmatmul.mubr.bf16.gmra.mrb[0].mxu0 %v599
  %v636 = vpop.f32.mrb[0].mxu0
  %v637 = vadd.f32 0.0, %v636
  %v638 = vpop.f32.mrb[0].mxu0
  %v639 = vpop.f32.mrb[0].mxu0
  %v640 = vpop.f32.mrb[0].mxu0
  %641 = vdwg.mxu0
  %v642 = vadd.f32 %v601, %v637
  %v643 = vmax.f32 %v642, 0.0
  %v644 = vpack.c.bf16 %v643, %v643
  %v646 = vrot.slane %v644, 4
  %648 = vst [vmem:[#allocation4 + $0x18] sm:$0xf0] %v646
  %649 = vst [vmem:[#allocation2] sm:$0xff] %v643
  %v650 = vld [vmem:[#allocation4] sm:$0xff]
  %v651 = vld [vmem:[#allocation4 + $0x8] sm:$0xff]
  %v652 = vld [vmem:[#allocation4 + $0x10] sm:$0xff]
  %v653 = vld [vmem:[#allocation4 + $0x18] sm:$0xff]
  %v654 = vld [vmem:[%s5] sm:$0xf]
  %v655 = vld [vmem:[%s5 + $0x4] sm:$0xf]
  %v656 = vld [vmem:[%s5 + $0x8] sm:$0xf]
  %v657 = vld [vmem:[%s5 + $0xc] sm:$0xf]
  %v658 = vld [vmem:[%s5 + $0x10] sm:$0xf]
  %v659 = vld [vmem:[%s5 + $0x14] sm:$0xf]
  %v660 = vld [vmem:[%s5 + $0x18] sm:$0xf]
  %v661 = vld [vmem:[%s5 + $0x1c] sm:$0xf]
  %v662 = vld [vmem:[%s5 + $0x20] sm:$0xf]
  %v663 = vld [vmem:[%s5 + $0x24] sm:$0xf]
  %v664 = vld [vmem:[%s5 + $0x28] sm:$0xf]
  %v665 = vld [vmem:[%s5 + $0x2c] sm:$0xf]
  %v666 = vld [vmem:[%s5 + $0x30] sm:$0xf]
  %v667 = vld [vmem:[%s5 + $0x34] sm:$0xf]
  %v668 = vld [vmem:[%s5 + $0x38] sm:$0xf]
  %v669 = vld [vmem:[%s5 + $0x3c] sm:$0xf]
  %v670 = vld [vmem:[%s6] sm:$0x1]
  %v672 = vlaneseq
  %v673 = vshrl.u32 %v672, 7
  %v674 = vsub.s32 0, %v673
  %v675 = vrot.slane %v670, %v674
  %v693 = vunpack.c.l.b16 %v654
  %v694 = vunpack.c.l.b16 %v655
  %v695 = vunpack.c.l.b16 %v656
  %v696 = vunpack.c.l.b16 %v657
  %v697 = vunpack.c.l.b16 %v658
  %v698 = vunpack.c.l.b16 %v659
  %v699 = vunpack.c.l.b16 %v660
  %v700 = vunpack.c.l.b16 %v661
  %v701 = vunpack.c.l.b16 %v662
  %v702 = vunpack.c.l.b16 %v663
  %v703 = vunpack.c.l.b16 %v664
  %v704 = vunpack.c.l.b16 %v665
  %v705 = vunpack.c.l.b16 %v666
  %v706 = vunpack.c.l.b16 %v667
  %v707 = vunpack.c.l.b16 %v668
  %v708 = vunpack.c.l.b16 %v669
  %v709 = vpack.c.b16 %v694, %v693
  %v710 = vpack.c.b16 %v696, %v695
  %v711 = vpack.c.b16 %v698, %v697
  %v712 = vpack.c.b16 %v700, %v699
  %v713 = vpack.c.b16 %v702, %v701
  %v714 = vpack.c.b16 %v704, %v703
  %v715 = vpack.c.b16 %v706, %v705
  %v716 = vpack.c.b16 %v708, %v707
  %725 = vmatprep.subr.bf16.mxu0 0
  %726 = vmatpush1.bf16.msra.mxu0 %v709
  %727 = vmatprep.subr.bf16.mxu0 0
  %728 = vmatpush1.bf16.msra.mxu0 %v710
  %729 = vmatprep.subr.bf16.mxu0 0
  %730 = vmatpush1.bf16.msra.mxu0 %v711
  %731 = vmatprep.subr.bf16.mxu0 0
  %732 = vmatpush1.bf16.msra.mxu0 %v712
  %733 = vmatprep.subr.bf16.mxu0 0
  %734 = vmatpush1.bf16.msra.mxu0 %v713
  %735 = vmatprep.subr.bf16.mxu0 0
  %736 = vmatpush1.bf16.msra.mxu0 %v714
  %737 = vmatprep.subr.bf16.mxu0 0
  %738 = vmatpush1.bf16.msra.mxu0 %v715
  %739 = vmatprep.subr.bf16.mxu0 0
  %740 = vmatpush1.bf16.msra.mxu0 %v716
  %741 = vmatprep.subr.bf16.mxu0 0
  %742 = vmatpush1.bf16.msra.mxu0 0
  %743 = vmatprep.subr.bf16.mxu0 0
  %744 = vmatpush1.bf16.msra.mxu0 0
  %745 = vmatprep.subr.bf16.mxu0 0
  %746 = vmatpush1.bf16.msra.mxu0 0
  %747 = vmatprep.subr.bf16.mxu0 0
  %748 = vmatpush1.bf16.msra.mxu0 0
  %749 = vmatprep.subr.bf16.mxu0 0
  %750 = vmatpush1.bf16.msra.mxu0 0
  %751 = vmatprep.subr.bf16.mxu0 0
  %752 = vmatpush1.bf16.msra.mxu0 0
  %753 = vmatprep.subr.bf16.mxu0 0
  %754 = vmatpush1.bf16.msra.mxu0 0
  %755 = vmatprep.subr.bf16.mxu0 0
  %756 = vmatpush1.bf16.msra.mxu0 0
  %757 = vmatprep.mubr.bf16.mxu0 0
  %758 = vmatmul.mubr.bf16.gmra.mrb[0].mxu0 %v650
  %v759 = vpop.f32.mrb[0].mxu0
  %v760 = vadd.f32 %v675, %v759
  %v761 = vpop.f32.mrb[0].mxu0
  %v762 = vpop.f32.mrb[0].mxu0
  %v763 = vadd.f32 %v675, %v762
  %v764 = vpop.f32.mrb[0].mxu0
  %765 = vmatprep.mubr.bf16.mxu0 0
  %766 = vmatmul.mubr.bf16.gmra.mrb[0].mxu0 %v651
  %v767 = vpop.f32.mrb[0].mxu0
  %v768 = vadd.f32 %v675, %v767
  %v769 = vpop.f32.mrb[0].mxu0
  %v770 = vpop.f32.mrb[0].mxu0
  %v771 = vadd.f32 %v675, %v770
  %v772 = vpop.f32.mrb[0].mxu0
  %773 = vmatprep.mubr.bf16.mxu0 0
  %774 = vmatmul.mubr.bf16.gmra.mrb[0].mxu0 %v652
  %v775 = vpop.f32.mrb[0].mxu0
  %v776 = vadd.f32 %v675, %v775
  %v777 = vpop.f32.mrb[0].mxu0
  %v778 = vpop.f32.mrb[0].mxu0
  %v779 = vadd.f32 %v675, %v778
  %v780 = vpop.f32.mrb[0].mxu0
  %781 = vmatprep.mubr.bf16.mxu0 0
  %782 = vmatmul.mubr.bf16.gmra.mrb[0].mxu0 %v653
  %v783 = vpop.f32.mrb[0].mxu0
  %v784 = vadd.f32 %v675, %v783
  %v785 = vpop.f32.mrb[0].mxu0
  %v786 = vpop.f32.mrb[0].mxu0
  %v787 = vadd.f32 %v675, %v786
  %v788 = vpop.f32.mrb[0].mxu0
  %789 = vdwg.mxu0
  %790 = vst [vmem:[%s7] sm:$0xff] %v760
  %s791 = scalar_lea.vmem %s7, 8
  %792 = vst [vmem:[%s791] sm:$0xff] %v763
  %s793 = scalar_lea.vmem %s7, 16
  %794 = vst [vmem:[%s793] sm:$0xff] %v768
  %s795 = scalar_lea.vmem %s7, 24
  %796 = vst [vmem:[%s795] sm:$0xff] %v771
  %s797 = scalar_lea.vmem %s7, 32
  %798 = vst [vmem:[%s797] sm:$0xff] %v776
  %s799 = scalar_lea.vmem %s7, 40
  %800 = vst [vmem:[%s799] sm:$0xff] %v779
  %s801 = scalar_lea.vmem %s7, 48
  %802 = vst [vmem:[%s801] sm:$0xff] %v784
  %s803 = scalar_lea.vmem %s7, 56
  %804 = vst [vmem:[%s803] sm:$0xff] %v787
  // Predicated region
  $region34: #{rnn_forward.3} parent=0 // pred_check
    %p805 = pneg %p29
  $region35: #{rnn_forward.3} parent=0 // pred_check_branch
    %807 = sbr.rel (%p805) target = $region37
  $region36: #{rnn_forward.3} parent=0 // pred_region
    %808 = vst [vmem:[%s8] sm:$0xff] %v643
  $region37: #{rnn_forward.3} parent=0 // pred_fallthru
    _
  // Predicated region
  $region38: #{rnn_forward.3} parent=0 // pred_check
    _
  $region39: #{rnn_forward.3} parent=0 // pred_check_branch
    %810 = sbr.rel (0) target = $region41
  $region40: #{rnn_forward.3} parent=0 // pred_region
    _
  $region41: #{rnn_forward.3} parent=0 // pred_fallthru
    _
  // Predicated region
  $region42: #{rnn_forward.3} parent=0 // pred_check
    _
  $region43: #{rnn_forward.3} parent=0 // pred_check_branch
    %812 = sbr.rel (0) target = $region45
  $region44: #{rnn_forward.3} parent=0 // pred_region
    _
  $region45: #{rnn_forward.3} parent=0 // pred_fallthru
    _
  // Predicated region
  $region46: #{rnn_forward.3} parent=0 // pred_check
    _
  $region47: #{rnn_forward.3} parent=0 // pred_check_branch
    %814 = sbr.rel (0) target = $region49
  $region48: #{rnn_forward.3} parent=0 // pred_region
    _
  $region49: #{rnn_forward.3} parent=0 // pred_fallthru
    _
  // Predicated region
  $region50: #{rnn_forward.3} parent=0 // pred_check
    _
  $region51: #{rnn_forward.3} parent=0 // pred_check_branch
    %816 = sbr.rel (0) target = $region53
  $region52: #{rnn_forward.3} parent=0 // pred_region
    _
  $region53: #{rnn_forward.3} parent=0 // pred_fallthru
    _

</llo_original>
